<compile_context>
chip_gen: v6e
topology: v6e:2x2x1
jax: 0.10.0
libtpu: 0.0.40
codegen_flags: <defaults>
</compile_context>

<pallas_src>
import jax
import jax.numpy as jnp
from jax.experimental import pallas as pl
from jax.experimental.pallas import tpu as pltpu

H1 = 512   # first hidden width
H2 = 256   # second hidden width


def _round_up(x, m):
    return ((x + m - 1) // m) * m


def _critic_kernel(x_ref, w1_ref, b1_ref, w2_ref, b2_ref, w3_ref, b3_ref,
                   o_ref, acc_ref):
    # Grid: (b, k).  k tiles the flattened-image contraction dim of layer 1.
    k = pl.program_id(1)

    @pl.when(k == 0)
    def _():
        acc_ref[...] = jnp.zeros_like(acc_ref)

    # Layer-1 partial product for this K tile (bf16 in, f32 accumulate on MXU).
    acc_ref[...] += jnp.dot(x_ref[...], w1_ref[...],
                            preferred_element_type=jnp.float32)

    @pl.when(k == pl.num_programs(1) - 1)
    def _():
        h1 = acc_ref[...] + b1_ref[...]                  # f32 bias add
        h1 = jnp.maximum(h1, 0.2 * h1)                   # LeakyReLU(0.2)

        h2 = jnp.dot(h1.astype(w2_ref.dtype), w2_ref[...],
                     preferred_element_type=jnp.float32) + b2_ref[...]
        h2 = jnp.maximum(h2, 0.2 * h2)                   # LeakyReLU(0.2)

        # Linear(256 -> 1) as a lane reduction (VPU mul + XLU reduce); the
        # MXU stays free and we skip a 1-column matmul pass.
        w3_row = w3_ref[...].astype(jnp.float32)         # (1, H2)
        out = jnp.sum(h2 * w3_row, axis=-1, keepdims=True) + b3_ref[...]
        o_ref[...] = out.astype(o_ref.dtype)


def critic_forward(img, params, *, tb=128, tk=512):
    """img: (B, C, H, W) float32.  Returns validity: (B, 1) float32."""
    w1, b1, w2, b2, w3, b3 = params
    B = img.shape[0]
    x = img.reshape(B, -1)                               # img.view(B, -1)
    D = x.shape[1]
    assert w1.shape[0] == D

    # ---- tile selection & padding (MXU / sublane friendly) -------------
    TB = min(tb, _round_up(B, 16))                       # batch tile (bf16 sublane)
    B_pad = _round_up(B, TB)
    TK = tk if D >= tk else _round_up(D, 128)            # layer-1 K tile (lane mult.)
    D_pad = _round_up(D, TK)

    cdt = jnp.bfloat16                                   # streamed dtype

    x_p = jnp.zeros((B_pad, D_pad), cdt).at[:B, :D].set(x.astype(cdt))
    w1_p = jnp.zeros((D_pad, H1), cdt).at[:D, :].set(w1.astype(cdt))
    w2_c = w2.astype(cdt)
    w3_c = w3.astype(cdt)                                # (1, H2) row
    b1_c = b1.astype(jnp.float32)
    b2_c = b2.astype(jnp.float32)
    b3_c = b3.astype(jnp.float32)

    nb = B_pad // TB
    nk = D_pad // TK

    const = lambda shape: pl.BlockSpec(shape, lambda b, k: (0,) * len(shape))

    flops = 2 * B_pad * (D_pad * H1 + H1 * H2 + H2)
    bytes_accessed = int(
        x_p.size * 2 + w1_p.size * 2 + w2_c.size * 2 + w3_c.size * 2
        + (b1_c.size + b2_c.size + b3_c.size) * 4 + B_pad * 4)

    out = pl.pallas_call(
        _critic_kernel,
        out_shape=jax.ShapeDtypeStruct((B_pad, 1), jnp.float32),
        grid=(nb, nk),
        in_specs=[
            pl.BlockSpec((TB, TK), lambda b, k: (b, k)),   # x tile (streams over k)
            pl.BlockSpec((TK, H1), lambda b, k: (k, 0)),   # w1 tile (streams over k)
            const((1, H1)),                                # b1  (resident)
            const((H1, H2)),                               # w2  (resident)
            const((1, H2)),                                # b2
            const((1, H2)),                                # w3 row
            const((1, 1)),                                 # b3
        ],
        out_specs=pl.BlockSpec((TB, 1), lambda b, k: (b, 0)),
        scratch_shapes=[pltpu.VMEM((TB, H1), jnp.float32)],   # layer-1 f32 acc
        compiler_params=pltpu.CompilerParams(
            dimension_semantics=("parallel", "arbitrary"),
            vmem_limit_bytes=32 << 20,   # headroom on v7x (64 MiB physical)
        ),
        cost_estimate=pl.CostEstimate(flops=flops, transcendentals=0,
                                      bytes_accessed=bytes_accessed),
    )(x_p, w1_p, b1_c, w2_c, b2_c, w3_c, b3_c)

    return out[:B]


def init_params(key, in_features, dtype=jnp.float32):
    """PyTorch-Linear-style U(-1/sqrt(fan_in), 1/sqrt(fan_in)) init.

    w1: (D, 512), w2: (512, 256) stored (in, out) so the kernel does x @ W.
    w3: (1, 256) kept as a row (same layout as PyTorch's (out=1, in=256))
    for the in-kernel lane reduction.  Biases: (1, out)."""
    def u(k, shape, fan_in):
        bound = 1.0 / (fan_in ** 0.5)
        return jax.random.uniform(k, shape, dtype, -bound, bound)

    key, k1w, k1b, k2w, k2b, k3w, k3b = jax.random.split(key, 7)
    w1 = u(k1w, (in_features, H1), in_features)
    b1 = u(k1b, (1, H1), in_features)
    w2 = u(k2w, (H1, H2), H1)
    b2 = u(k2b, (1, H2), H1)
    w3 = u(k3w, (1, H2), H2)
    b3 = u(k3b, (1, 1), H2)
    return (w1, b1, w2, b2, w3, b3)


if __name__ == "__main__":
    key = jax.random.PRNGKey(0)
    key, k_img = jax.random.split(key)

    # Small img_shape consistent with the module: (C, H, W) = (4, 16, 16)
    B, C, Him, Wim = 2, 4, 16, 16
    img = jax.random.normal(k_img, (B, C, Him, Wim), dtype=jnp.float32)

    params = init_params(key, in_features=C * Him * Wim)

    validity = critic_forward(img, params)
    validity = jax.block_until_ready(validity)

    # Reference with the same bf16 weight/activation quantization, f32 accum.
    w1, b1, w2, b2, w3, b3 = params
    bf = jnp.bfloat16
    xf = img.reshape(B, -1).astype(bf)
    r1 = jnp.dot(xf, w1.astype(bf), preferred_element_type=jnp.float32) + b1
    r1 = jnp.maximum(r1, 0.2 * r1)
    r2 = jnp.dot(r1.astype(bf), w2.astype(bf),
                 preferred_element_type=jnp.float32) + b2
    r2 = jnp.maximum(r2, 0.2 * r2)
    ref = jnp.sum(r2 * w3.astype(bf).astype(jnp.float32),
                  axis=-1, keepdims=True) + b3

    assert validity.shape == (B, 1)
    assert jnp.allclose(validity, ref, atol=1e-2, rtol=1e-2), (
        float(jnp.max(jnp.abs(validity - ref))))

    print("KERNEL_OK")
</pallas_src>

<mosaic_0001>
module attributes {stable_mosaic.version = 11 : i64} {
  func.func @_critic_kernel(%arg0: i32, %arg1: i32, %arg2: memref<16x512xbf16, #tpu.memory_space<vmem>>, %arg3: memref<512x512xbf16, #tpu.memory_space<vmem>>, %arg4: memref<1x512xf32, #tpu.memory_space<vmem>>, %arg5: memref<512x256xbf16, #tpu.memory_space<vmem>>, %arg6: memref<1x256xf32, #tpu.memory_space<vmem>>, %arg7: memref<1x256xbf16, #tpu.memory_space<vmem>>, %arg8: memref<1x1xf32, #tpu.memory_space<vmem>>, %arg9: memref<16x1xf32, #tpu.memory_space<vmem>>, %arg10: memref<16x512xf32, #tpu.memory_space<vmem>>) attributes {dimension_semantics = [#tpu.dimension_semantics<parallel>, #tpu.dimension_semantics<arbitrary>], iteration_bounds = array<i64: 1, 2>, scalar_prefetch = 0 : i64, scratch_operands = 1 : i64, tpu.core_type = #tpu.core_type<tc>, window_params = [{transform_indices = @transform_0, window_bounds = array<i64: 16, 512>}, {transform_indices = @transform_1, window_bounds = array<i64: 512, 512>}, {pipeline_mode = #tpu.pipeline_mode<synchronous>, transform_indices = @transform_2, window_bounds = array<i64: 1, 512>}, {pipeline_mode = #tpu.pipeline_mode<synchronous>, transform_indices = @transform_3, window_bounds = array<i64: 512, 256>}, {pipeline_mode = #tpu.pipeline_mode<synchronous>, transform_indices = @transform_4, window_bounds = array<i64: 1, 256>}, {pipeline_mode = #tpu.pipeline_mode<synchronous>, transform_indices = @transform_5, window_bounds = array<i64: 1, 256>}, {pipeline_mode = #tpu.pipeline_mode<synchronous>, transform_indices = @transform_6, window_bounds = array<i64: 1, 1>}, {transform_indices = @transform_7, window_bounds = array<i64: 16, 1>}]} {
    %c0_i32 = arith.constant 0 : i32
    %0 = arith.cmpi eq, %arg1, %c0_i32 : i32
    %1 = arith.extui %0 : i1 to i32
    %c0_i32_0 = arith.constant 0 : i32
    %2 = arith.cmpi ne, %1, %c0_i32_0 : i32
    scf.if %2 {
      %cst_9 = arith.constant 0.000000e+00 : f32
      %12 = vector.broadcast %cst_9 : f32 to vector<16x512xf32>
      %c0_10 = arith.constant 0 : index
      %c0_11 = arith.constant 0 : index
      %13 = vector.load %arg10[%c0_10, %c0_11] : memref<16x512xf32, #tpu.memory_space<vmem>>, vector<16x512xf32>
      tpu.vector_store %arg10[%c0_10, %c0_11], %12 {strides = array<i32>} : memref<16x512xf32, #tpu.memory_space<vmem>>, vector<16x512xf32>,
    } else {
    }
    %c0 = arith.constant 0 : index
    %c0_1 = arith.constant 0 : index
    %3 = vector.load %arg10[%c0, %c0_1] : memref<16x512xf32, #tpu.memory_space<vmem>>, vector<16x512xf32>
    %c0_2 = arith.constant 0 : index
    %c0_3 = arith.constant 0 : index
    %4 = vector.load %arg2[%c0_2, %c0_3] : memref<16x512xbf16, #tpu.memory_space<vmem>>, vector<16x512xbf16>
    %c0_4 = arith.constant 0 : index
    %c0_5 = arith.constant 0 : index
    %5 = vector.load %arg3[%c0_4, %c0_5] : memref<512x512xbf16, #tpu.memory_space<vmem>>, vector<512x512xbf16>
    %cst = arith.constant dense<0.000000e+00> : vector<16x512xf32>
    %6 = tpu.matmul %4, %5, %cst {dimension_numbers = #tpu.dot_dimension_numbers<[1], [0], [0], [1], [0, 0, 1, 1], [], []>} : vector<16x512xbf16>, vector<512x512xbf16>, vector<16x512xf32> -> vector<16x512xf32>
    %7 = arith.addf %3, %6 : vector<16x512xf32>
    %c0_6 = arith.constant 0 : index
    %c0_7 = arith.constant 0 : index
    %8 = vector.load %arg10[%c0_6, %c0_7] : memref<16x512xf32, #tpu.memory_space<vmem>>, vector<16x512xf32>
    tpu.vector_store %arg10[%c0_6, %c0_7], %7 {strides = array<i32>} : memref<16x512xf32, #tpu.memory_space<vmem>>, vector<16x512xf32>,
    %c1_i32 = arith.constant 1 : i32
    %9 = arith.cmpi eq, %arg1, %c1_i32 : i32
    %10 = arith.extui %9 : i1 to i32
    %c0_i32_8 = arith.constant 0 : i32
    %11 = arith.cmpi ne, %10, %c0_i32_8 : i32
    scf.if %11 {
      %c0_9 = arith.constant 0 : index
      %c0_10 = arith.constant 0 : index
      %12 = vector.load %arg10[%c0_9, %c0_10] : memref<16x512xf32, #tpu.memory_space<vmem>>, vector<16x512xf32>
      %c0_11 = arith.constant 0 : index
      %c0_12 = arith.constant 0 : index
      %13 = vector.load %arg4[%c0_11, %c0_12] : memref<1x512xf32, #tpu.memory_space<vmem>>, vector<1x512xf32>
      %14 = vector.broadcast %13 : vector<1x512xf32> to vector<16x512xf32>
      %15 = arith.addf %12, %14 : vector<16x512xf32>
      %cst_13 = arith.constant 2.000000e-01 : f32
      %16 = vector.broadcast %cst_13 : f32 to vector<16x512xf32>
      %17 = arith.mulf %16, %15 : vector<16x512xf32>
      %18 = arith.maximumf %15, %17 : vector<16x512xf32>
      %19 = arith.truncf %18 : vector<16x512xf32> to vector<16x512xbf16>
      %c0_14 = arith.constant 0 : index
      %c0_15 = arith.constant 0 : index
      %20 = vector.load %arg5[%c0_14, %c0_15] : memref<512x256xbf16, #tpu.memory_space<vmem>>, vector<512x256xbf16>
      %cst_16 = arith.constant dense<0.000000e+00> : vector<16x256xf32>
      %21 = tpu.matmul %19, %20, %cst_16 {dimension_numbers = #tpu.dot_dimension_numbers<[1], [0], [0], [1], [0, 0, 1, 1], [], []>} : vector<16x512xbf16>, vector<512x256xbf16>, vector<16x256xf32> -> vector<16x256xf32>
      %c0_17 = arith.constant 0 : index
      %c0_18 = arith.constant 0 : index
      %22 = vector.load %arg6[%c0_17, %c0_18] : memref<1x256xf32, #tpu.memory_space<vmem>>, vector<1x256xf32>
      %23 = vector.broadcast %22 : vector<1x256xf32> to vector<16x256xf32>
      %24 = arith.addf %21, %23 : vector<16x256xf32>
      %cst_19 = arith.constant 2.000000e-01 : f32
      %25 = vector.broadcast %cst_19 : f32 to vector<16x256xf32>
      %26 = arith.mulf %25, %24 : vector<16x256xf32>
      %27 = arith.maximumf %24, %26 : vector<16x256xf32>
      %c0_20 = arith.constant 0 : index
      %c0_21 = arith.constant 0 : index
      %28 = vector.load %arg7[%c0_20, %c0_21] : memref<1x256xbf16, #tpu.memory_space<vmem>>, vector<1x256xbf16>
      %29 = arith.extf %28 : vector<1x256xbf16> to vector<1x256xf32>
      %30 = vector.broadcast %29 : vector<1x256xf32> to vector<16x256xf32>
      %31 = arith.mulf %27, %30 : vector<16x256xf32>
      %cst_22 = arith.constant dense<0.000000e+00> : vector<16xf32>
      %32 = vector.multi_reduction <add>, %31, %cst_22 [1] : vector<16x256xf32> to vector<16xf32>
      %33 = vector.shape_cast %32 : vector<16xf32> to vector<16x1xf32>
      %c0_23 = arith.constant 0 : index
      %c0_24 = arith.constant 0 : index
      %34 = vector.load %arg8[%c0_23, %c0_24] : memref<1x1xf32, #tpu.memory_space<vmem>>, vector<1x1xf32>
      %35 = vector.broadcast %34 : vector<1x1xf32> to vector<16x1xf32>
      %36 = arith.addf %33, %35 : vector<16x1xf32>
      %c0_25 = arith.constant 0 : index
      %c0_26 = arith.constant 0 : index
      %37 = vector.load %arg9[%c0_25, %c0_26] : memref<16x1xf32, #tpu.memory_space<vmem>>, vector<16x1xf32>
      tpu.vector_store %arg9[%c0_25, %c0_26], %36 {strides = array<i32>} : memref<16x1xf32, #tpu.memory_space<vmem>>, vector<16x1xf32>,
    } else {
    }
    return
  }
  func.func @transform_0(%arg0: i32, %arg1: i32) -> (i32, i32) {
    %c0_i32 = arith.constant 0 : i32
    return %arg0, %arg1 : i32, i32
  }
  func.func @transform_1(%arg0: i32, %arg1: i32) -> (i32, i32) {
    %c0_i32 = arith.constant 0 : i32
    %c0_i32_0 = arith.constant 0 : i32
    return %arg1, %c0_i32 : i32, i32
  }
  func.func @transform_2(%arg0: i32, %arg1: i32) -> (i32, i32) {
    %c0_i32 = arith.constant 0 : i32
    %c0_i32_0 = arith.constant 0 : i32
    %c0_i32_1 = arith.constant 0 : i32
    return %c0_i32, %c0_i32_0 : i32, i32
  }
  func.func @transform_3(%arg0: i32, %arg1: i32) -> (i32, i32) {
    %c0_i32 = arith.constant 0 : i32
    %c0_i32_0 = arith.constant 0 : i32
    %c0_i32_1 = arith.constant 0 : i32
    return %c0_i32, %c0_i32_0 : i32, i32
  }
  func.func @transform_4(%arg0: i32, %arg1: i32) -> (i32, i32) {
    %c0_i32 = arith.constant 0 : i32
    %c0_i32_0 = arith.constant 0 : i32
    %c0_i32_1 = arith.constant 0 : i32
    return %c0_i32, %c0_i32_0 : i32, i32
  }
  func.func @transform_5(%arg0: i32, %arg1: i32) -> (i32, i32) {
    %c0_i32 = arith.constant 0 : i32
    %c0_i32_0 = arith.constant 0 : i32
    %c0_i32_1 = arith.constant 0 : i32
    return %c0_i32, %c0_i32_0 : i32, i32
  }
  func.func @transform_6(%arg0: i32, %arg1: i32) -> (i32, i32) {
    %c0_i32 = arith.constant 0 : i32
    %c0_i32_0 = arith.constant 0 : i32
    %c0_i32_1 = arith.constant 0 : i32
    return %c0_i32, %c0_i32_0 : i32, i32
  }
  func.func @transform_7(%arg0: i32, %arg1: i32) -> (i32, i32) {
    %c0_i32 = arith.constant 0 : i32
    %c0_i32_0 = arith.constant 0 : i32
    return %arg0, %c0_i32 : i32, i32
  }
}

</mosaic_0001>

<llo_original>
// kernel: tpu_custom_call.1
$region0: #{tpu_custom_call.1}
  #allocation0 [shape = 'u32[]', space=smem, size = 0x4, offset = 0x4, fixed_abs, tag = 'smem constant byte address 0x4 - core index']
  #allocation1 [shape = 'u32[144,128]{1,0:T(1,128)}', space=vmem, size = 0x12000, scoped, tag = 'internal scratch']
  #allocation2 [shape = 'f32[16,512]{1,0:T(8,128)}', space=vmem, size = 0x8000, scoped, tag = 'scratch operand']
  #allocation3 [shape = 'f32[1,1]{1,0:T(1,128)S(1)}', space=vmem, size = 0x200, scoped, tag = 'scoped memory for tpu_custom_call.1']
  %s0 = inlined_call_operand.hbm [shape: bf16[16,1024], index: 0, kind: input, shape index: {}]
  %s1 = inlined_call_operand.hbm [shape: bf16[1024,512], index: 1, kind: input, shape index: {}]
  %s2 = inlined_call_operand.vmem [shape: f32[1,512], index: 2, kind: input, shape index: {}]
  %s3 = inlined_call_operand.hbm [shape: bf16[512,256], index: 3, kind: input, shape index: {}]
  %s4 = inlined_call_operand.vmem [shape: f32[1,256], index: 4, kind: input, shape index: {}]
  %s5 = inlined_call_operand.vmem [shape: bf16[1,256], index: 5, kind: input, shape index: {}]
  %s6 = inlined_call_operand.<no memory space> [shape: f32[1,1], index: 6, kind: input, shape index: {}]
  %s7 = inlined_call_operand.vmem [shape: f32[16,1], index: 7, kind: output, shape index: {}]
  %s8 = sld [smem:[#allocation0]]
  $region81: #{tpu_custom_call.1} parent=0
    _
  %s10 = ssub.s32 1, %s8
  %s11 = scalar_select 0, %s10, %s8
  %v12 = vstv %s6
  %13 = vst [vmem:[#allocation3] sm:$0x1] %v12
  $region1: #{tpu_custom_call.1} parent=0
    #allocation4 [shape = 'u8[32768]{0}', space=vmem, size = 0x8000, scoped, tag = 'input window, operand 0']
    #allocation5 [shape = 's32[2]{0}', space=sflag, size = 0x8, scoped, tag = 'scoped memory for tpu_custom_call.1']
    #allocation6 [shape = 'u8[1048576]{0}', space=vmem, size = 0x100000, scoped, tag = 'input window, operand 1']
    #allocation7 [shape = 's32[2]{0}', space=sflag, size = 0x8, scoped, tag = 'scoped memory for tpu_custom_call.1']
    #allocation8 [shape = 'u8[262144]{0}', space=vmem, size = 0x40000, scoped, tag = 'input window, operand 3, single buffered']
    %14 = vsyncpa [#allocation5], 0
    %s15 = scalar_lea.sflag [#allocation5], 1
    %16 = vsyncpa %s15, 0
    %17 = vsyncpa [#allocation7], 0
    %s18 = scalar_lea.sflag [#allocation7], 1
    %19 = vsyncpa %s18, 0
    loop: start=0, step=1, limit=4
    $region2: #{tpu_custom_call.1} parent=1 // loop_pre_header
      _
    $region3: #{tpu_custom_call.1} parent=1 // loop_header
      %s21 = sphi 0, %s25
      %p22 = scmp.ge.s32.totalorder %s21, 4
      %s28 = sphi 0, %s40
      %s29 = sphi 0, %s36
      %s30 = sphi 0, %s28
      %s31 = sphi 0, %s29
      %s32 = sphi 0, %s30
      %s33 = sphi 0, %s31
      %s45 = sphi 0, %s47
      %s48 = sphi 0, %s45
      %s49 = sphi 0, %s48
      %s65 = sphi 0, %s49
      %s71 = sphi 0, %s73
      %s74 = sphi 0, %s71
      %s75 = sphi 0, %s74
      %s91 = sphi 0, %s75
      %s95 = sphi 0, %s95
      %s97 = sphi 0, %s95
      %s98 = sphi 0, %s97
      %s112 = sphi 0, %s98
      %s116 = sphi 0, %s116
      %s118 = sphi 0, %s116
      %s119 = sphi 0, %s118
      %s133 = sphi 0, %s119
      %s137 = sphi 0, %s137
      %s139 = sphi 0, %s137
      %s140 = sphi 0, %s139
      %s154 = sphi 0, %s140
      %s158 = sphi 0, %s158
      %s160 = sphi 0, %s158
      %s161 = sphi 0, %s160
      %s175 = sphi 0, %s161
      %s179 = sphi 0, %s179
      %s181 = sphi 0, %s179
      %s182 = sphi 0, %s181
      %s196 = sphi 0, %s182
      %s202 = sphi 0, %s204
      %s205 = sphi 0, %s202
      %s206 = sphi 0, %s205
      %s222 = sphi 0, %s206
    $region4: #{tpu_custom_call.1} parent=1 // loop_header_branch
      %24 = sbr.rel (%p22) target = $region8
    $region5: #{tpu_custom_call.1} parent=1 // loop_body
      %s26 = ssub.s32 %s21, 1
      %s27 = ssub.s32 %s21, 2
      %s34 = sadd.s32 1, %s29
      %p35 = scmp.ge.s32.totalorder %s34, 2
      %s36 = scalar_select %p35, 0, %s34
      %s37 = sadd.s32 1, %s28
      %s38 = scalar_select %p35, %s37, %s28
      %p39 = scmp.ge.s32.totalorder %s38, 1
      %s40 = scalar_select %p39, 0, %s38
      %s41 = ssub.s32 %s28, %s40
      %s42 = ssub.s32 %s29, %s36
      %s43 = sor.u32 %s41, %s42
      %p44 = scmp.eq.s32.totalorder %s43, 0
      %s46 = sadd.s32 %s45, 1
      %s47 = scalar_select %p44, %s45, %s46
      %p50 = pneg %p44
      %p51 = scmp.eq.s32.totalorder %s21, 1
      %p52 = por %p50, %p51
      %p53 = scmp.ne.s32.totalorder %s45, %s48
      %p54 = scmp.eq.s32.totalorder %s21, 0
      %p55 = por %p53, %p54
      %p56 = scmp.ne.s32.totalorder %s45, %s48
      %p57 = scmp.eq.s32.totalorder %s26, 1
      %p58 = por %p56, %p57
      %p59 = scmp.ne.s32.totalorder %s48, %s49
      %p60 = scmp.eq.s32.totalorder %s26, 0
      %p61 = por %p59, %p60
      %p62 = scmp.ne.s32.totalorder %s48, %s49
      %p63 = scmp.eq.s32.totalorder %s27, 1
      %p64 = por %p62, %p63
      %p66 = scmp.ne.s32.totalorder %s49, %s65
      %p67 = scmp.eq.s32.totalorder %s27, 0
      %p68 = por %p66, %p67
      %s69 = ssub.s32 %s29, %s36
      %p70 = scmp.eq.s32.totalorder %s69, 0
      %s72 = sadd.s32 %s71, 1
      %s73 = scalar_select %p70, %s71, %s72
      %p76 = pneg %p70
      %p77 = scmp.eq.s32.totalorder %s21, 1
      %p78 = por %p76, %p77
      %p79 = scmp.ne.s32.totalorder %s71, %s74
      %p80 = scmp.eq.s32.totalorder %s21, 0
      %p81 = por %p79, %p80
      %p82 = scmp.ne.s32.totalorder %s71, %s74
      %p83 = scmp.eq.s32.totalorder %s26, 1
      %p84 = por %p82, %p83
      %p85 = scmp.ne.s32.totalorder %s74, %s75
      %p86 = scmp.eq.s32.totalorder %s26, 0
      %p87 = por %p85, %p86
      %p88 = scmp.ne.s32.totalorder %s74, %s75
      %p89 = scmp.eq.s32.totalorder %s27, 1
      %p90 = por %p88, %p89
      %p92 = scmp.ne.s32.totalorder %s75, %s91
      %p93 = scmp.eq.s32.totalorder %s27, 0
      %p94 = por %p92, %p93
      %s96 = sadd.s32 %s95, 1
      %p99 = scmp.eq.s32.totalorder %s21, 1
      %p100 = scmp.ne.s32.totalorder %s95, %s97
      %p101 = scmp.eq.s32.totalorder %s21, 0
      %p102 = por %p100, %p101
      %p103 = scmp.ne.s32.totalorder %s95, %s97
      %p104 = scmp.eq.s32.totalorder %s26, 1
      %p105 = por %p103, %p104
      %p106 = scmp.ne.s32.totalorder %s97, %s98
      %p107 = scmp.eq.s32.totalorder %s26, 0
      %p108 = por %p106, %p107
      %p109 = scmp.ne.s32.totalorder %s97, %s98
      %p110 = scmp.eq.s32.totalorder %s27, 1
      %p111 = por %p109, %p110
      %p113 = scmp.ne.s32.totalorder %s98, %s112
      %p114 = scmp.eq.s32.totalorder %s27, 0
      %p115 = por %p113, %p114
      %s117 = sadd.s32 %s116, 1
      %p120 = scmp.eq.s32.totalorder %s21, 1
      %p121 = scmp.ne.s32.totalorder %s116, %s118
      %p122 = scmp.eq.s32.totalorder %s21, 0
      %p123 = por %p121, %p122
      %p124 = scmp.ne.s32.totalorder %s116, %s118
      %p125 = scmp.eq.s32.totalorder %s26, 1
      %p126 = por %p124, %p125
      %p127 = scmp.ne.s32.totalorder %s118, %s119
      %p128 = scmp.eq.s32.totalorder %s26, 0
      %p129 = por %p127, %p128
      %p130 = scmp.ne.s32.totalorder %s118, %s119
      %p131 = scmp.eq.s32.totalorder %s27, 1
      %p132 = por %p130, %p131
      %p134 = scmp.ne.s32.totalorder %s119, %s133
      %p135 = scmp.eq.s32.totalorder %s27, 0
      %p136 = por %p134, %p135
      %s138 = sadd.s32 %s137, 1
      %p141 = scmp.eq.s32.totalorder %s21, 1
      %p142 = scmp.ne.s32.totalorder %s137, %s139
      %p143 = scmp.eq.s32.totalorder %s21, 0
      %p144 = por %p142, %p143
      %p145 = scmp.ne.s32.totalorder %s137, %s139
      %p146 = scmp.eq.s32.totalorder %s26, 1
      %p147 = por %p145, %p146
      %p148 = scmp.ne.s32.totalorder %s139, %s140
      %p149 = scmp.eq.s32.totalorder %s26, 0
      %p150 = por %p148, %p149
      %p151 = scmp.ne.s32.totalorder %s139, %s140
      %p152 = scmp.eq.s32.totalorder %s27, 1
      %p153 = por %p151, %p152
      %p155 = scmp.ne.s32.totalorder %s140, %s154
      %p156 = scmp.eq.s32.totalorder %s27, 0
      %p157 = por %p155, %p156
      %s159 = sadd.s32 %s158, 1
      %p162 = scmp.eq.s32.totalorder %s21, 1
      %p163 = scmp.ne.s32.totalorder %s158, %s160
      %p164 = scmp.eq.s32.totalorder %s21, 0
      %p165 = por %p163, %p164
      %p166 = scmp.ne.s32.totalorder %s158, %s160
      %p167 = scmp.eq.s32.totalorder %s26, 1
      %p168 = por %p166, %p167
      %p169 = scmp.ne.s32.totalorder %s160, %s161
      %p170 = scmp.eq.s32.totalorder %s26, 0
      %p171 = por %p169, %p170
      %p172 = scmp.ne.s32.totalorder %s160, %s161
      %p173 = scmp.eq.s32.totalorder %s27, 1
      %p174 = por %p172, %p173
      %p176 = scmp.ne.s32.totalorder %s161, %s175
      %p177 = scmp.eq.s32.totalorder %s27, 0
      %p178 = por %p176, %p177
      %s180 = sadd.s32 %s179, 1
      %p183 = scmp.eq.s32.totalorder %s21, 1
      %p184 = scmp.ne.s32.totalorder %s179, %s181
      %p185 = scmp.eq.s32.totalorder %s21, 0
      %p186 = por %p184, %p185
      %p187 = scmp.ne.s32.totalorder %s179, %s181
      %p188 = scmp.eq.s32.totalorder %s26, 1
      %p189 = por %p187, %p188
      %p190 = scmp.ne.s32.totalorder %s181, %s182
      %p191 = scmp.eq.s32.totalorder %s26, 0
      %p192 = por %p190, %p191
      %p193 = scmp.ne.s32.totalorder %s181, %s182
      %p194 = scmp.eq.s32.totalorder %s27, 1
      %p195 = por %p193, %p194
      %p197 = scmp.ne.s32.totalorder %s182, %s196
      %p198 = scmp.eq.s32.totalorder %s27, 0
      %p199 = por %p197, %p198
      %s200 = ssub.s32 %s28, %s40
      %p201 = scmp.eq.s32.totalorder %s200, 0
      %s203 = sadd.s32 %s202, 1
      %s204 = scalar_select %p201, %s202, %s203
      %p207 = pneg %p201
      %p208 = scmp.eq.s32.totalorder %s21, 1
      %p209 = por %p207, %p208
      %p210 = scmp.ne.s32.totalorder %s202, %s205
      %p211 = scmp.eq.s32.totalorder %s21, 0
      %p212 = por %p210, %p211
      %p213 = scmp.ne.s32.totalorder %s202, %s205
      %p214 = scmp.eq.s32.totalorder %s26, 1
      %p215 = por %p213, %p214
      %p216 = scmp.ne.s32.totalorder %s205, %s206
      %p217 = scmp.eq.s32.totalorder %s26, 0
      %p218 = por %p216, %p217
      %p219 = scmp.ne.s32.totalorder %s205, %s206
      %p220 = scmp.eq.s32.totalorder %s27, 1
      %p221 = por %p219, %p220
      %p223 = scmp.ne.s32.totalorder %s206, %s222
      %p224 = scmp.eq.s32.totalorder %s27, 0
      %p225 = por %p223, %p224
      %p226 = scmp.le.s32.totalorder 1, %s21
      %p227 = scmp.lt.s32.totalorder %s21, 3
      %p228 = pnand %p226, %p227
      %p229 = pneg %p228
      // Predicated region
      $region9: #{tpu_custom_call.1} parent=5 // pred_check
        _
      $region10: #{tpu_custom_call.1} parent=5 // pred_check_branch
        %231 = sbr.rel (%p228) target = $region12
      $region11: #{tpu_custom_call.1} parent=5 // pred_region
        %s232 = ssub.s32 %s21, 1
        // Predicated region
        $region13: #{tpu_custom_call.1} parent=11 // pred_check
          %p233 = pneg %p108
        $region14: #{tpu_custom_call.1} parent=11 // pred_check_branch
          %235 = sbr.rel (%p233) target = $region16
        $region15: #{tpu_custom_call.1} parent=11 // pred_region
          _
        $region16: #{tpu_custom_call.1} parent=11 // pred_fallthru
          _
        // Predicated region
        $region17: #{tpu_custom_call.1} parent=11 // pred_check
          %p236 = pneg %p129
        $region18: #{tpu_custom_call.1} parent=11 // pred_check_branch
          %238 = sbr.rel (%p236) target = $region20
        $region19: #{tpu_custom_call.1} parent=11 // pred_region
          %s240 = ssub.s32 8192, 8192
          %241 = vsyncadd [#allocation7], %s240
          %s242 = sshll.u32 [#allocation8], 4
          %s243 = int_to_ptr.vmem [resolvable:$true] %s242
          %248 = dma.hbm_to_vmem [thread:$0]  %s3, 8192, %s243, [#allocation7], 128, 128, 8
        $region20: #{tpu_custom_call.1} parent=11 // pred_fallthru
          _
        // Predicated region
        $region21: #{tpu_custom_call.1} parent=11 // pred_check
          %p249 = pneg %p150
        $region22: #{tpu_custom_call.1} parent=11 // pred_check_branch
          %251 = sbr.rel (%p249) target = $region24
        $region23: #{tpu_custom_call.1} parent=11 // pred_region
          _
        $region24: #{tpu_custom_call.1} parent=11 // pred_fallthru
          _
        // Predicated region
        $region25: #{tpu_custom_call.1} parent=11 // pred_check
          %p252 = pneg %p171
        $region26: #{tpu_custom_call.1} parent=11 // pred_check_branch
          %254 = sbr.rel (%p252) target = $region28
        $region27: #{tpu_custom_call.1} parent=11 // pred_region
          _
        $region28: #{tpu_custom_call.1} parent=11 // pred_fallthru
          _
        // Predicated region
        $region29: #{tpu_custom_call.1} parent=11 // pred_check
          %p255 = pneg %p192
        $region30: #{tpu_custom_call.1} parent=11 // pred_check_branch
          %257 = sbr.rel (%p255) target = $region32
        $region31: #{tpu_custom_call.1} parent=11 // pred_region
          _
        $region32: #{tpu_custom_call.1} parent=11 // pred_fallthru
          _
      $region12: #{tpu_custom_call.1} parent=5 // pred_fallthru
        _
      %p258 = scmp.lt.s32.totalorder %s21, 2
      // Predicated region
      $region33: #{tpu_custom_call.1} parent=5 // pred_check
        %p259 = pneg %p258
      $region34: #{tpu_custom_call.1} parent=5 // pred_check_branch
        %261 = sbr.rel (%p259) target = $region36
      $region35: #{tpu_custom_call.1} parent=5 // pred_region
        // Predicated region
        $region37: #{tpu_custom_call.1} parent=35 // pred_check
          %p262 = pneg %p55
        $region38: #{tpu_custom_call.1} parent=35 // pred_check_branch
          %264 = sbr.rel (%p262) target = $region40
        $region39: #{tpu_custom_call.1} parent=35 // pred_region
          %s265 = sand.u32 %s45, 1
          %s266 = scalar_lea.sflag [#allocation5], %s265
          %s267 = sand.u32 %s45, 1
          %s268 = smul.addr %s267, 32
          %s269 = scalar_lea.vmem [#allocation4], %s268
          %s270 = smul.u32 2, %s28
          %s271 = smul.u32 4, %s29
          %s273 = ssub.s32 512, 512
          %274 = vsyncadd %s266, %s273
          %s275 = smul.addr %s270, 8
          %s276 = sadd.s32 %s271, %s275
          %s277 = smul.addr %s276, 64
          %s278 = scalar_lea.hbm %s0, %s277
          %s279 = sshll.u32 %s269, 4
          %s280 = int_to_ptr.vmem [resolvable:$true] %s279
          %285 = dma.hbm_to_vmem [thread:$0]  %s278, 512, %s280, %s266, 512, 256, 16
        $region40: #{tpu_custom_call.1} parent=35 // pred_fallthru
          _
        // Predicated region
        $region41: #{tpu_custom_call.1} parent=35 // pred_check
          %p286 = pneg %p81
        $region42: #{tpu_custom_call.1} parent=35 // pred_check_branch
          %288 = sbr.rel (%p286) target = $region44
        $region43: #{tpu_custom_call.1} parent=35 // pred_region
          %s289 = sand.u32 %s21, 1
          %s290 = scalar_lea.sflag [#allocation7], %s289
          %s291 = sand.u32 %s71, 1
          %s292 = smul.addr %s291, 1024
          %s293 = scalar_lea.vmem [#allocation6], %s292
          %s294 = smul.u32 64, %s29
          %s296 = ssub.s32 16384, 16384
          %297 = vsyncadd %s290, %s296
          %s298 = smul.addr %s294, 4
          %s299 = smul.addr %s298, 64
          %s300 = scalar_lea.hbm %s1, %s299
          %s301 = sshll.u32 %s293, 4
          %s302 = int_to_ptr.vmem [resolvable:$true] %s301
          %307 = dma.hbm_to_vmem [thread:$0]  %s300, 16384, %s302, %s290, 256, 256, 16
        $region44: #{tpu_custom_call.1} parent=35 // pred_fallthru
          _
      $region36: #{tpu_custom_call.1} parent=5 // pred_fallthru
        _
      %p308 = scmp.le.s32.totalorder 1, %s21
      %p309 = scmp.lt.s32.totalorder %s21, 3
      %p310 = pnand %p308, %p309
      %p311 = pneg %p310
      // Predicated region
      $region45: #{tpu_custom_call.1} parent=5 // pred_check
        _
      $region46: #{tpu_custom_call.1} parent=5 // pred_check_branch
        %313 = sbr.rel (%p310) target = $region48
      $region47: #{tpu_custom_call.1} parent=5 // pred_region
        %s314 = ssub.s32 %s21, 1
        %s315 = sand.u32 %s48, 1
        %s316 = scalar_lea.sflag [#allocation5], %s315
        %s317 = sand.u32 %s48, 1
        %s318 = smul.addr %s317, 32
        %s319 = scalar_lea.vmem [#allocation4], %s318
        // Predicated region
        $region49: #{tpu_custom_call.1} parent=47 // pred_check
          %p320 = pneg %p61
        $region50: #{tpu_custom_call.1} parent=47 // pred_check_branch
          %322 = sbr.rel (%p320) target = $region52
        $region51: #{tpu_custom_call.1} parent=47 // pred_region
          %323 = dma.done %s316, 512
        $region52: #{tpu_custom_call.1} parent=47 // pred_fallthru
          _
        %s324 = sand.u32 %s26, 1
        %s325 = scalar_lea.sflag [#allocation7], %s324
        %s326 = sand.u32 %s74, 1
        %s327 = smul.addr %s326, 1024
        %s328 = scalar_lea.vmem [#allocation6], %s327
        // Predicated region
        $region53: #{tpu_custom_call.1} parent=47 // pred_check
          %p329 = pneg %p87
        $region54: #{tpu_custom_call.1} parent=47 // pred_check_branch
          %331 = sbr.rel (%p329) target = $region56
        $region55: #{tpu_custom_call.1} parent=47 // pred_region
          %332 = dma.done %s325, 16384
        $region56: #{tpu_custom_call.1} parent=47 // pred_fallthru
          _
        // Predicated region
        $region57: #{tpu_custom_call.1} parent=47 // pred_check
          %p333 = pneg %p129
        $region58: #{tpu_custom_call.1} parent=47 // pred_check_branch
          %335 = sbr.rel (%p333) target = $region60
        $region59: #{tpu_custom_call.1} parent=47 // pred_region
          %336 = dma.done [#allocation7], 8192
        $region60: #{tpu_custom_call.1} parent=47 // pred_fallthru
          _
        %s337 = sand.u32 %s48, 1
        %s338 = scalar_lea.sflag [#allocation5], %s337
        %s339 = sand.u32 %s48, 1
        %s340 = smul.addr %s339, 32
        %s341 = scalar_lea.vmem [#allocation4], %s340
        %p342 = pneg %p61
        %p343 = pneg %p58
        %s344 = sand.u32 %s26, 1
        %s345 = scalar_lea.sflag [#allocation7], %s344
        %s346 = sand.u32 %s74, 1
        %s347 = smul.addr %s346, 1024
        %s348 = scalar_lea.vmem [#allocation6], %s347
        %p349 = pneg %p87
        %p350 = pneg %p84
        %p351 = pneg %p108
        %p352 = pneg %p105
        %p353 = pneg %p129
        %p354 = pneg %p126
        %p355 = pneg %p150
        %p356 = pneg %p147
        %p357 = pneg %p171
        %p358 = pneg %p168
        %p359 = pneg %p192
        %p360 = pneg %p189
        %p361 = pneg %p218
        %p362 = pneg %p215
        %s363 = smul.u32 2, %s30
        %p364 = scmp.lt.s32.totalorder %s363, 1
        %s365 = scalar_select %p364, %s363, 1
        %s366 = smul.addr %s365, 8
        %s367 = scalar_lea.vmem %s7, %s366
        %s368 = smul.u32 2, %s30
        %s369 = smul.u32 4, %s31
        %s370 = smul.u32 64, %s31
        %s371 = smul.u32 2, %s30
        %p372 = scmp.lt.s32.totalorder %s371, 1
        %s373 = scalar_select %p372, %s371, 1
        %s374 = smul.addr %s373, 8
        %s375 = scalar_lea.vmem %s7, %s374
        %s376 = smul.u32 2, %s30
        %p377 = scmp.eq.s32.totalorder %s31, 0
        // Predicated region
        $region61: #{tpu_custom_call.1} parent=47 // pred_check
          %p378 = pneg %p377
        $region62: #{tpu_custom_call.1} parent=47 // pred_check_branch
          %380 = sbr.rel (%p378) target = $region64
        $region63: #{tpu_custom_call.1} parent=47 // pred_region
          %381 = vst [vmem:[#allocation2] sm:$0xff] 0.0
          %382 = vst [vmem:[#allocation2 + $0x8] sm:$0xff] 0.0
          %383 = vst [vmem:[#allocation2 + $0x10] sm:$0xff] 0.0
          %384 = vst [vmem:[#allocation2 + $0x18] sm:$0xff] 0.0
          %385 = vst [vmem:[#allocation2 + $0x20] sm:$0xff] 0.0
          %386 = vst [vmem:[#allocation2 + $0x28] sm:$0xff] 0.0
          %387 = vst [vmem:[#allocation2 + $0x30] sm:$0xff] 0.0
          %388 = vst [vmem:[#allocation2 + $0x38] sm:$0xff] 0.0
        $region64: #{tpu_custom_call.1} parent=47 // pred_fallthru
          _
        %v389 = vld [vmem:[#allocation2] sm:$0xff]
        %v390 = vld [vmem:[#allocation2 + $0x8] sm:$0xff]
        %v391 = vld [vmem:[#allocation2 + $0x10] sm:$0xff]
        %v392 = vld [vmem:[#allocation2 + $0x18] sm:$0xff]
        %v393 = vld [vmem:[#allocation2 + $0x20] sm:$0xff]
        %v394 = vld [vmem:[#allocation2 + $0x28] sm:$0xff]
        %v395 = vld [vmem:[#allocation2 + $0x30] sm:$0xff]
        %v396 = vld [vmem:[#allocation2 + $0x38] sm:$0xff]
        %v397 = vld [vmem:[%s319] sm:$0xff]
        %v398 = vld [vmem:[%s319 + $0x8] sm:$0xff]
        %v399 = vld [vmem:[%s319 + $0x10] sm:$0xff]
        %v400 = vld [vmem:[%s319 + $0x18] sm:$0xff]
        %v401 = vld [vmem:[%s328] sm:$0xff]
        %v402 = vld [vmem:[%s328 + $0x8] sm:$0xff]
        %v403 = vld [vmem:[%s328 + $0x10] sm:$0xff]
        %v404 = vld [vmem:[%s328 + $0x18] sm:$0xff]
        %v405 = vld [vmem:[%s328 + $0x20] sm:$0xff]
        %v406 = vld [vmem:[%s328 + $0x28] sm:$0xff]
        %v407 = vld [vmem:[%s328 + $0x30] sm:$0xff]
        %v408 = vld [vmem:[%s328 + $0x38] sm:$0xff]
        %v409 = vld [vmem:[%s328 + $0x40] sm:$0xff]
        %v410 = vld [vmem:[%s328 + $0x48] sm:$0xff]
        %v411 = vld [vmem:[%s328 + $0x50] sm:$0xff]
        %v412 = vld [vmem:[%s328 + $0x58] sm:$0xff]
        %v413 = vld [vmem:[%s328 + $0x60] sm:$0xff]
        %v414 = vld [vmem:[%s328 + $0x68] sm:$0xff]
        %v415 = vld [vmem:[%s328 + $0x70] sm:$0xff]
        %v416 = vld [vmem:[%s328 + $0x78] sm:$0xff]
        %v417 = vld [vmem:[%s328 + $0x80] sm:$0xff]
        %v418 = vld [vmem:[%s328 + $0x88] sm:$0xff]
        %v419 = vld [vmem:[%s328 + $0x90] sm:$0xff]
        %v420 = vld [vmem:[%s328 + $0x98] sm:$0xff]
        %v421 = vld [vmem:[%s328 + $0xa0] sm:$0xff]
        %v422 = vld [vmem:[%s328 + $0xa8] sm:$0xff]
        %v423 = vld [vmem:[%s328 + $0xb0] sm:$0xff]
        %v424 = vld [vmem:[%s328 + $0xb8] sm:$0xff]
        %v425 = vld [vmem:[%s328 + $0xc0] sm:$0xff]
        %v426 = vld [vmem:[%s328 + $0xc8] sm:$0xff]
        %v427 = vld [vmem:[%s328 + $0xd0] sm:$0xff]
        %v428 = vld [vmem:[%s328 + $0xd8] sm:$0xff]
        %v429 = vld [vmem:[%s328 + $0xe0] sm:$0xff]
        %v430 = vld [vmem:[%s328 + $0xe8] sm:$0xff]
        %v431 = vld [vmem:[%s328 + $0xf0] sm:$0xff]
        %v432 = vld [vmem:[%s328 + $0xf8] sm:$0xff]
        %v433 = vld [vmem:[%s328 + $0x100] sm:$0xff]
        %v434 = vld [vmem:[%s328 + $0x108] sm:$0xff]
        %v435 = vld [vmem:[%s328 + $0x110] sm:$0xff]
        %v436 = vld [vmem:[%s328 + $0x118] sm:$0xff]
        %v437 = vld [vmem:[%s328 + $0x120] sm:$0xff]
        %v438 = vld [vmem:[%s328 + $0x128] sm:$0xff]
        %v439 = vld [vmem:[%s328 + $0x130] sm:$0xff]
        %v440 = vld [vmem:[%s328 + $0x138] sm:$0xff]
        %v441 = vld [vmem:[%s328 + $0x140] sm:$0xff]
        %v442 = vld [vmem:[%s328 + $0x148] sm:$0xff]
        %v443 = vld [vmem:[%s328 + $0x150] sm:$0xff]
        %v444 = vld [vmem:[%s328 + $0x158] sm:$0xff]
        %v445 = vld [vmem:[%s328 + $0x160] sm:$0xff]
        %v446 = vld [vmem:[%s328 + $0x168] sm:$0xff]
        %v447 = vld [vmem:[%s328 + $0x170] sm:$0xff]
        %v448 = vld [vmem:[%s328 + $0x178] sm:$0xff]
        %v449 = vld [vmem:[%s328 + $0x180] sm:$0xff]
        %v450 = vld [vmem:[%s328 + $0x188] sm:$0xff]
        %v451 = vld [vmem:[%s328 + $0x190] sm:$0xff]
        %v452 = vld [vmem:[%s328 + $0x198] sm:$0xff]
        %v453 = vld [vmem:[%s328 + $0x1a0] sm:$0xff]
        %v454 = vld [vmem:[%s328 + $0x1a8] sm:$0xff]
        %v455 = vld [vmem:[%s328 + $0x1b0] sm:$0xff]
        %v456 = vld [vmem:[%s328 + $0x1b8] sm:$0xff]
        %v457 = vld [vmem:[%s328 + $0x1c0] sm:$0xff]
        %v458 = vld [vmem:[%s328 + $0x1c8] sm:$0xff]
        %v459 = vld [vmem:[%s328 + $0x1d0] sm:$0xff]
        %v460 = vld [vmem:[%s328 + $0x1d8] sm:$0xff]
        %v461 = vld [vmem:[%s328 + $0x1e0] sm:$0xff]
        %v462 = vld [vmem:[%s328 + $0x1e8] sm:$0xff]
        %v463 = vld [vmem:[%s328 + $0x1f0] sm:$0xff]
        %v464 = vld [vmem:[%s328 + $0x1f8] sm:$0xff]
        %v465 = vld [vmem:[%s328 + $0x200] sm:$0xff]
        %v466 = vld [vmem:[%s328 + $0x208] sm:$0xff]
        %v467 = vld [vmem:[%s328 + $0x210] sm:$0xff]
        %v468 = vld [vmem:[%s328 + $0x218] sm:$0xff]
        %v469 = vld [vmem:[%s328 + $0x220] sm:$0xff]
        %v470 = vld [vmem:[%s328 + $0x228] sm:$0xff]
        %v471 = vld [vmem:[%s328 + $0x230] sm:$0xff]
        %v472 = vld [vmem:[%s328 + $0x238] sm:$0xff]
        %v473 = vld [vmem:[%s328 + $0x240] sm:$0xff]
        %v474 = vld [vmem:[%s328 + $0x248] sm:$0xff]
        %v475 = vld [vmem:[%s328 + $0x250] sm:$0xff]
        %v476 = vld [vmem:[%s328 + $0x258] sm:$0xff]
        %v477 = vld [vmem:[%s328 + $0x260] sm:$0xff]
        %v478 = vld [vmem:[%s328 + $0x268] sm:$0xff]
        %v479 = vld [vmem:[%s328 + $0x270] sm:$0xff]
        %v480 = vld [vmem:[%s328 + $0x278] sm:$0xff]
        %v481 = vld [vmem:[%s328 + $0x280] sm:$0xff]
        %v482 = vld [vmem:[%s328 + $0x288] sm:$0xff]
        %v483 = vld [vmem:[%s328 + $0x290] sm:$0xff]
        %v484 = vld [vmem:[%s328 + $0x298] sm:$0xff]
        %v485 = vld [vmem:[%s328 + $0x2a0] sm:$0xff]
        %v486 = vld [vmem:[%s328 + $0x2a8] sm:$0xff]
        %v487 = vld [vmem:[%s328 + $0x2b0] sm:$0xff]
        %v488 = vld [vmem:[%s328 + $0x2b8] sm:$0xff]
        %v489 = vld [vmem:[%s328 + $0x2c0] sm:$0xff]
        %v490 = vld [vmem:[%s328 + $0x2c8] sm:$0xff]
        %v491 = vld [vmem:[%s328 + $0x2d0] sm:$0xff]
        %v492 = vld [vmem:[%s328 + $0x2d8] sm:$0xff]
        %v493 = vld [vmem:[%s328 + $0x2e0] sm:$0xff]
        %v494 = vld [vmem:[%s328 + $0x2e8] sm:$0xff]
        %v495 = vld [vmem:[%s328 + $0x2f0] sm:$0xff]
        %v496 = vld [vmem:[%s328 + $0x2f8] sm:$0xff]
        %v497 = vld [vmem:[%s328 + $0x300] sm:$0xff]
        %v498 = vld [vmem:[%s328 + $0x308] sm:$0xff]
        %v499 = vld [vmem:[%s328 + $0x310] sm:$0xff]
        %v500 = vld [vmem:[%s328 + $0x318] sm:$0xff]
        %v501 = vld [vmem:[%s328 + $0x320] sm:$0xff]
        %v502 = vld [vmem:[%s328 + $0x328] sm:$0xff]
        %v503 = vld [vmem:[%s328 + $0x330] sm:$0xff]
        %v504 = vld [vmem:[%s328 + $0x338] sm:$0xff]
        %v505 = vld [vmem:[%s328 + $0x340] sm:$0xff]
        %v506 = vld [vmem:[%s328 + $0x348] sm:$0xff]
        %v507 = vld [vmem:[%s328 + $0x350] sm:$0xff]
        %v508 = vld [vmem:[%s328 + $0x358] sm:$0xff]
        %v509 = vld [vmem:[%s328 + $0x360] sm:$0xff]
        %v510 = vld [vmem:[%s328 + $0x368] sm:$0xff]
        %v511 = vld [vmem:[%s328 + $0x370] sm:$0xff]
        %v512 = vld [vmem:[%s328 + $0x378] sm:$0xff]
        %v513 = vld [vmem:[%s328 + $0x380] sm:$0xff]
        %v514 = vld [vmem:[%s328 + $0x388] sm:$0xff]
        %v515 = vld [vmem:[%s328 + $0x390] sm:$0xff]
        %v516 = vld [vmem:[%s328 + $0x398] sm:$0xff]
        %v517 = vld [vmem:[%s328 + $0x3a0] sm:$0xff]
        %v518 = vld [vmem:[%s328 + $0x3a8] sm:$0xff]
        %v519 = vld [vmem:[%s328 + $0x3b0] sm:$0xff]
        %v520 = vld [vmem:[%s328 + $0x3b8] sm:$0xff]
        %v521 = vld [vmem:[%s328 + $0x3c0] sm:$0xff]
        %v522 = vld [vmem:[%s328 + $0x3c8] sm:$0xff]
        %v523 = vld [vmem:[%s328 + $0x3d0] sm:$0xff]
        %v524 = vld [vmem:[%s328 + $0x3d8] sm:$0xff]
        %v525 = vld [vmem:[%s328 + $0x3e0] sm:$0xff]
        %v526 = vld [vmem:[%s328 + $0x3e8] sm:$0xff]
        %v527 = vld [vmem:[%s328 + $0x3f0] sm:$0xff]
        %v528 = vld [vmem:[%s328 + $0x3f8] sm:$0xff]
        %v533 = vunpack.c.l.b16 %v397
        %v534 = vunpack.c.h.b16 %v397
        %v535 = vunpack.c.l.b16 %v398
        %v536 = vunpack.c.h.b16 %v398
        %v537 = vunpack.c.l.b16 %v399
        %v538 = vunpack.c.h.b16 %v399
        %v539 = vunpack.c.l.b16 %v400
        %v540 = vunpack.c.h.b16 %v400
        %v541 = vpack.c.b16 %v537, %v533
        %v542 = vpack.c.b16 %v538, %v534
        %v543 = vpack.c.b16 %v539, %v535
        %v544 = vpack.c.b16 %v540, %v536
        %v677 = vunpack.c.l.b16 %v401
        %v678 = vunpack.c.h.b16 %v401
        %v679 = vunpack.c.l.b16 %v402
        %v680 = vunpack.c.h.b16 %v402
        %v681 = vunpack.c.l.b16 %v403
        %v682 = vunpack.c.h.b16 %v403
        %v683 = vunpack.c.l.b16 %v404
        %v684 = vunpack.c.h.b16 %v404
        %v685 = vunpack.c.l.b16 %v405
        %v686 = vunpack.c.h.b16 %v405
        %v687 = vunpack.c.l.b16 %v406
        %v688 = vunpack.c.h.b16 %v406
        %v689 = vunpack.c.l.b16 %v407
        %v690 = vunpack.c.h.b16 %v407
        %v691 = vunpack.c.l.b16 %v408
        %v692 = vunpack.c.h.b16 %v408
        %v693 = vunpack.c.l.b16 %v409
        %v694 = vunpack.c.h.b16 %v409
        %v695 = vunpack.c.l.b16 %v410
        %v696 = vunpack.c.h.b16 %v410
        %v697 = vunpack.c.l.b16 %v411
        %v698 = vunpack.c.h.b16 %v411
        %v699 = vunpack.c.l.b16 %v412
        %v700 = vunpack.c.h.b16 %v412
        %v701 = vunpack.c.l.b16 %v413
        %v702 = vunpack.c.h.b16 %v413
        %v703 = vunpack.c.l.b16 %v414
        %v704 = vunpack.c.h.b16 %v414
        %v705 = vunpack.c.l.b16 %v415
        %v706 = vunpack.c.h.b16 %v415
        %v707 = vunpack.c.l.b16 %v416
        %v708 = vunpack.c.h.b16 %v416
        %v709 = vunpack.c.l.b16 %v417
        %v710 = vunpack.c.h.b16 %v417
        %v711 = vunpack.c.l.b16 %v418
        %v712 = vunpack.c.h.b16 %v418
        %v713 = vunpack.c.l.b16 %v419
        %v714 = vunpack.c.h.b16 %v419
        %v715 = vunpack.c.l.b16 %v420
        %v716 = vunpack.c.h.b16 %v420
        %v717 = vunpack.c.l.b16 %v421
        %v718 = vunpack.c.h.b16 %v421
        %v719 = vunpack.c.l.b16 %v422
        %v720 = vunpack.c.h.b16 %v422
        %v721 = vunpack.c.l.b16 %v423
        %v722 = vunpack.c.h.b16 %v423
        %v723 = vunpack.c.l.b16 %v424
        %v724 = vunpack.c.h.b16 %v424
        %v725 = vunpack.c.l.b16 %v425
        %v726 = vunpack.c.h.b16 %v425
        %v727 = vunpack.c.l.b16 %v426
        %v728 = vunpack.c.h.b16 %v426
        %v729 = vunpack.c.l.b16 %v427
        %v730 = vunpack.c.h.b16 %v427
        %v731 = vunpack.c.l.b16 %v428
        %v732 = vunpack.c.h.b16 %v428
        %v733 = vunpack.c.l.b16 %v429
        %v734 = vunpack.c.h.b16 %v429
        %v735 = vunpack.c.l.b16 %v430
        %v736 = vunpack.c.h.b16 %v430
        %v737 = vunpack.c.l.b16 %v431
        %v738 = vunpack.c.h.b16 %v431
        %v739 = vunpack.c.l.b16 %v432
        %v740 = vunpack.c.h.b16 %v432
        %v741 = vunpack.c.l.b16 %v433
        %v742 = vunpack.c.h.b16 %v433
        %v743 = vunpack.c.l.b16 %v434
        %v744 = vunpack.c.h.b16 %v434
        %v745 = vunpack.c.l.b16 %v435
        %v746 = vunpack.c.h.b16 %v435
        %v747 = vunpack.c.l.b16 %v436
        %v748 = vunpack.c.h.b16 %v436
        %v749 = vunpack.c.l.b16 %v437
        %v750 = vunpack.c.h.b16 %v437
        %v751 = vunpack.c.l.b16 %v438
        %v752 = vunpack.c.h.b16 %v438
        %v753 = vunpack.c.l.b16 %v439
        %v754 = vunpack.c.h.b16 %v439
        %v755 = vunpack.c.l.b16 %v440
        %v756 = vunpack.c.h.b16 %v440
        %v757 = vunpack.c.l.b16 %v441
        %v758 = vunpack.c.h.b16 %v441
        %v759 = vunpack.c.l.b16 %v442
        %v760 = vunpack.c.h.b16 %v442
        %v761 = vunpack.c.l.b16 %v443
        %v762 = vunpack.c.h.b16 %v443
        %v763 = vunpack.c.l.b16 %v444
        %v764 = vunpack.c.h.b16 %v444
        %v765 = vunpack.c.l.b16 %v445
        %v766 = vunpack.c.h.b16 %v445
        %v767 = vunpack.c.l.b16 %v446
        %v768 = vunpack.c.h.b16 %v446
        %v769 = vunpack.c.l.b16 %v447
        %v770 = vunpack.c.h.b16 %v447
        %v771 = vunpack.c.l.b16 %v448
        %v772 = vunpack.c.h.b16 %v448
        %v773 = vunpack.c.l.b16 %v449
        %v774 = vunpack.c.h.b16 %v449
        %v775 = vunpack.c.l.b16 %v450
        %v776 = vunpack.c.h.b16 %v450
        %v777 = vunpack.c.l.b16 %v451
        %v778 = vunpack.c.h.b16 %v451
        %v779 = vunpack.c.l.b16 %v452
        %v780 = vunpack.c.h.b16 %v452
        %v781 = vunpack.c.l.b16 %v453
        %v782 = vunpack.c.h.b16 %v453
        %v783 = vunpack.c.l.b16 %v454
        %v784 = vunpack.c.h.b16 %v454
        %v785 = vunpack.c.l.b16 %v455
        %v786 = vunpack.c.h.b16 %v455
        %v787 = vunpack.c.l.b16 %v456
        %v788 = vunpack.c.h.b16 %v456
        %v789 = vunpack.c.l.b16 %v457
        %v790 = vunpack.c.h.b16 %v457
        %v791 = vunpack.c.l.b16 %v458
        %v792 = vunpack.c.h.b16 %v458
        %v793 = vunpack.c.l.b16 %v459
        %v794 = vunpack.c.h.b16 %v459
        %v795 = vunpack.c.l.b16 %v460
        %v796 = vunpack.c.h.b16 %v460
        %v797 = vunpack.c.l.b16 %v461
        %v798 = vunpack.c.h.b16 %v461
        %v799 = vunpack.c.l.b16 %v462
        %v800 = vunpack.c.h.b16 %v462
        %v801 = vunpack.c.l.b16 %v463
        %v802 = vunpack.c.h.b16 %v463
        %v803 = vunpack.c.l.b16 %v464
        %v804 = vunpack.c.h.b16 %v464
        %v805 = vunpack.c.l.b16 %v465
        %v806 = vunpack.c.h.b16 %v465
        %v807 = vunpack.c.l.b16 %v466
        %v808 = vunpack.c.h.b16 %v466
        %v809 = vunpack.c.l.b16 %v467
        %v810 = vunpack.c.h.b16 %v467
        %v811 = vunpack.c.l.b16 %v468
        %v812 = vunpack.c.h.b16 %v468
        %v813 = vunpack.c.l.b16 %v469
        %v814 = vunpack.c.h.b16 %v469
        %v815 = vunpack.c.l.b16 %v470
        %v816 = vunpack.c.h.b16 %v470
        %v817 = vunpack.c.l.b16 %v471
        %v818 = vunpack.c.h.b16 %v471
        %v819 = vunpack.c.l.b16 %v472
        %v820 = vunpack.c.h.b16 %v472
        %v821 = vunpack.c.l.b16 %v473
        %v822 = vunpack.c.h.b16 %v473
        %v823 = vunpack.c.l.b16 %v474
        %v824 = vunpack.c.h.b16 %v474
        %v825 = vunpack.c.l.b16 %v475
        %v826 = vunpack.c.h.b16 %v475
        %v827 = vunpack.c.l.b16 %v476
        %v828 = vunpack.c.h.b16 %v476
        %v829 = vunpack.c.l.b16 %v477
        %v830 = vunpack.c.h.b16 %v477
        %v831 = vunpack.c.l.b16 %v478
        %v832 = vunpack.c.h.b16 %v478
        %v833 = vunpack.c.l.b16 %v479
        %v834 = vunpack.c.h.b16 %v479
        %v835 = vunpack.c.l.b16 %v480
        %v836 = vunpack.c.h.b16 %v480
        %v837 = vunpack.c.l.b16 %v481
        %v838 = vunpack.c.h.b16 %v481
        %v839 = vunpack.c.l.b16 %v482
        %v840 = vunpack.c.h.b16 %v482
        %v841 = vunpack.c.l.b16 %v483
        %v842 = vunpack.c.h.b16 %v483
        %v843 = vunpack.c.l.b16 %v484
        %v844 = vunpack.c.h.b16 %v484
        %v845 = vunpack.c.l.b16 %v485
        %v846 = vunpack.c.h.b16 %v485
        %v847 = vunpack.c.l.b16 %v486
        %v848 = vunpack.c.h.b16 %v486
        %v849 = vunpack.c.l.b16 %v487
        %v850 = vunpack.c.h.b16 %v487
        %v851 = vunpack.c.l.b16 %v488
        %v852 = vunpack.c.h.b16 %v488
        %v853 = vunpack.c.l.b16 %v489
        %v854 = vunpack.c.h.b16 %v489
        %v855 = vunpack.c.l.b16 %v490
        %v856 = vunpack.c.h.b16 %v490
        %v857 = vunpack.c.l.b16 %v491
        %v858 = vunpack.c.h.b16 %v491
        %v859 = vunpack.c.l.b16 %v492
        %v860 = vunpack.c.h.b16 %v492
        %v861 = vunpack.c.l.b16 %v493
        %v862 = vunpack.c.h.b16 %v493
        %v863 = vunpack.c.l.b16 %v494
        %v864 = vunpack.c.h.b16 %v494
        %v865 = vunpack.c.l.b16 %v495
        %v866 = vunpack.c.h.b16 %v495
        %v867 = vunpack.c.l.b16 %v496
        %v868 = vunpack.c.h.b16 %v496
        %v869 = vunpack.c.l.b16 %v497
        %v870 = vunpack.c.h.b16 %v497
        %v871 = vunpack.c.l.b16 %v498
        %v872 = vunpack.c.h.b16 %v498
        %v873 = vunpack.c.l.b16 %v499
        %v874 = vunpack.c.h.b16 %v499
        %v875 = vunpack.c.l.b16 %v500
        %v876 = vunpack.c.h.b16 %v500
        %v877 = vunpack.c.l.b16 %v501
        %v878 = vunpack.c.h.b16 %v501
        %v879 = vunpack.c.l.b16 %v502
        %v880 = vunpack.c.h.b16 %v502
        %v881 = vunpack.c.l.b16 %v503
        %v882 = vunpack.c.h.b16 %v503
        %v883 = vunpack.c.l.b16 %v504
        %v884 = vunpack.c.h.b16 %v504
        %v885 = vunpack.c.l.b16 %v505
        %v886 = vunpack.c.h.b16 %v505
        %v887 = vunpack.c.l.b16 %v506
        %v888 = vunpack.c.h.b16 %v506
        %v889 = vunpack.c.l.b16 %v507
        %v890 = vunpack.c.h.b16 %v507
        %v891 = vunpack.c.l.b16 %v508
        %v892 = vunpack.c.h.b16 %v508
        %v893 = vunpack.c.l.b16 %v509
        %v894 = vunpack.c.h.b16 %v509
        %v895 = vunpack.c.l.b16 %v510
        %v896 = vunpack.c.h.b16 %v510
        %v897 = vunpack.c.l.b16 %v511
        %v898 = vunpack.c.h.b16 %v511
        %v899 = vunpack.c.l.b16 %v512
        %v900 = vunpack.c.h.b16 %v512
        %v901 = vunpack.c.l.b16 %v513
        %v902 = vunpack.c.h.b16 %v513
        %v903 = vunpack.c.l.b16 %v514
        %v904 = vunpack.c.h.b16 %v514
        %v905 = vunpack.c.l.b16 %v515
        %v906 = vunpack.c.h.b16 %v515
        %v907 = vunpack.c.l.b16 %v516
        %v908 = vunpack.c.h.b16 %v516
        %v909 = vunpack.c.l.b16 %v517
        %v910 = vunpack.c.h.b16 %v517
        %v911 = vunpack.c.l.b16 %v518
        %v912 = vunpack.c.h.b16 %v518
        %v913 = vunpack.c.l.b16 %v519
        %v914 = vunpack.c.h.b16 %v519
        %v915 = vunpack.c.l.b16 %v520
        %v916 = vunpack.c.h.b16 %v520
        %v917 = vunpack.c.l.b16 %v521
        %v918 = vunpack.c.h.b16 %v521
        %v919 = vunpack.c.l.b16 %v522
        %v920 = vunpack.c.h.b16 %v522
        %v921 = vunpack.c.l.b16 %v523
        %v922 = vunpack.c.h.b16 %v523
        %v923 = vunpack.c.l.b16 %v524
        %v924 = vunpack.c.h.b16 %v524
        %v925 = vunpack.c.l.b16 %v525
        %v926 = vunpack.c.h.b16 %v525
        %v927 = vunpack.c.l.b16 %v526
        %v928 = vunpack.c.h.b16 %v526
        %v929 = vunpack.c.l.b16 %v527
        %v930 = vunpack.c.h.b16 %v527
        %v931 = vunpack.c.l.b16 %v528
        %v932 = vunpack.c.h.b16 %v528
        %v933 = vpack.c.b16 %v681, %v677
        %v934 = vpack.c.b16 %v682, %v678
        %v935 = vpack.c.b16 %v683, %v679
        %v936 = vpack.c.b16 %v684, %v680
        %v937 = vpack.c.b16 %v689, %v685
        %v938 = vpack.c.b16 %v690, %v686
        %v939 = vpack.c.b16 %v691, %v687
        %v940 = vpack.c.b16 %v692, %v688
        %v941 = vpack.c.b16 %v697, %v693
        %v942 = vpack.c.b16 %v698, %v694
        %v943 = vpack.c.b16 %v699, %v695
        %v944 = vpack.c.b16 %v700, %v696
        %v945 = vpack.c.b16 %v705, %v701
        %v946 = vpack.c.b16 %v706, %v702
        %v947 = vpack.c.b16 %v707, %v703
        %v948 = vpack.c.b16 %v708, %v704
        %v949 = vpack.c.b16 %v713, %v709
        %v950 = vpack.c.b16 %v714, %v710
        %v951 = vpack.c.b16 %v715, %v711
        %v952 = vpack.c.b16 %v716, %v712
        %v953 = vpack.c.b16 %v721, %v717
        %v954 = vpack.c.b16 %v722, %v718
        %v955 = vpack.c.b16 %v723, %v719
        %v956 = vpack.c.b16 %v724, %v720
        %v957 = vpack.c.b16 %v729, %v725
        %v958 = vpack.c.b16 %v730, %v726
        %v959 = vpack.c.b16 %v731, %v727
        %v960 = vpack.c.b16 %v732, %v728
        %v961 = vpack.c.b16 %v737, %v733
        %v962 = vpack.c.b16 %v738, %v734
        %v963 = vpack.c.b16 %v739, %v735
        %v964 = vpack.c.b16 %v740, %v736
        %v965 = vpack.c.b16 %v745, %v741
        %v966 = vpack.c.b16 %v746, %v742
        %v967 = vpack.c.b16 %v747, %v743
        %v968 = vpack.c.b16 %v748, %v744
        %v969 = vpack.c.b16 %v753, %v749
        %v970 = vpack.c.b16 %v754, %v750
        %v971 = vpack.c.b16 %v755, %v751
        %v972 = vpack.c.b16 %v756, %v752
        %v973 = vpack.c.b16 %v761, %v757
        %v974 = vpack.c.b16 %v762, %v758
        %v975 = vpack.c.b16 %v763, %v759
        %v976 = vpack.c.b16 %v764, %v760
        %v977 = vpack.c.b16 %v769, %v765
        %v978 = vpack.c.b16 %v770, %v766
        %v979 = vpack.c.b16 %v771, %v767
        %v980 = vpack.c.b16 %v772, %v768
        %v981 = vpack.c.b16 %v777, %v773
        %v982 = vpack.c.b16 %v778, %v774
        %v983 = vpack.c.b16 %v779, %v775
        %v984 = vpack.c.b16 %v780, %v776
        %v985 = vpack.c.b16 %v785, %v781
        %v986 = vpack.c.b16 %v786, %v782
        %v987 = vpack.c.b16 %v787, %v783
        %v988 = vpack.c.b16 %v788, %v784
        %v989 = vpack.c.b16 %v793, %v789
        %v990 = vpack.c.b16 %v794, %v790
        %v991 = vpack.c.b16 %v795, %v791
        %v992 = vpack.c.b16 %v796, %v792
        %v993 = vpack.c.b16 %v801, %v797
        %v994 = vpack.c.b16 %v802, %v798
        %v995 = vpack.c.b16 %v803, %v799
        %v996 = vpack.c.b16 %v804, %v800
        %v997 = vpack.c.b16 %v809, %v805
        %v998 = vpack.c.b16 %v810, %v806
        %v999 = vpack.c.b16 %v811, %v807
        %v1000 = vpack.c.b16 %v812, %v808
        %v1001 = vpack.c.b16 %v817, %v813
        %v1002 = vpack.c.b16 %v818, %v814
        %v1003 = vpack.c.b16 %v819, %v815
        %v1004 = vpack.c.b16 %v820, %v816
        %v1005 = vpack.c.b16 %v825, %v821
        %v1006 = vpack.c.b16 %v826, %v822
        %v1007 = vpack.c.b16 %v827, %v823
        %v1008 = vpack.c.b16 %v828, %v824
        %v1009 = vpack.c.b16 %v833, %v829
        %v1010 = vpack.c.b16 %v834, %v830
        %v1011 = vpack.c.b16 %v835, %v831
        %v1012 = vpack.c.b16 %v836, %v832
        %v1013 = vpack.c.b16 %v841, %v837
        %v1014 = vpack.c.b16 %v842, %v838
        %v1015 = vpack.c.b16 %v843, %v839
        %v1016 = vpack.c.b16 %v844, %v840
        %v1017 = vpack.c.b16 %v849, %v845
        %v1018 = vpack.c.b16 %v850, %v846
        %v1019 = vpack.c.b16 %v851, %v847
        %v1020 = vpack.c.b16 %v852, %v848
        %v1021 = vpack.c.b16 %v857, %v853
        %v1022 = vpack.c.b16 %v858, %v854
        %v1023 = vpack.c.b16 %v859, %v855
        %v1024 = vpack.c.b16 %v860, %v856
        %v1025 = vpack.c.b16 %v865, %v861
        %v1026 = vpack.c.b16 %v866, %v862
        %v1027 = vpack.c.b16 %v867, %v863
        %v1028 = vpack.c.b16 %v868, %v864
        %v1029 = vpack.c.b16 %v873, %v869
        %v1030 = vpack.c.b16 %v874, %v870
        %v1031 = vpack.c.b16 %v875, %v871
        %v1032 = vpack.c.b16 %v876, %v872
        %v1033 = vpack.c.b16 %v881, %v877
        %v1034 = vpack.c.b16 %v882, %v878
        %v1035 = vpack.c.b16 %v883, %v879
        %v1036 = vpack.c.b16 %v884, %v880
        %v1037 = vpack.c.b16 %v889, %v885
        %v1038 = vpack.c.b16 %v890, %v886
        %v1039 = vpack.c.b16 %v891, %v887
        %v1040 = vpack.c.b16 %v892, %v888
        %v1041 = vpack.c.b16 %v897, %v893
        %v1042 = vpack.c.b16 %v898, %v894
        %v1043 = vpack.c.b16 %v899, %v895
        %v1044 = vpack.c.b16 %v900, %v896
        %v1045 = vpack.c.b16 %v905, %v901
        %v1046 = vpack.c.b16 %v906, %v902
        %v1047 = vpack.c.b16 %v907, %v903
        %v1048 = vpack.c.b16 %v908, %v904
        %v1049 = vpack.c.b16 %v913, %v909
        %v1050 = vpack.c.b16 %v914, %v910
        %v1051 = vpack.c.b16 %v915, %v911
        %v1052 = vpack.c.b16 %v916, %v912
        %v1053 = vpack.c.b16 %v921, %v917
        %v1054 = vpack.c.b16 %v922, %v918
        %v1055 = vpack.c.b16 %v923, %v919
        %v1056 = vpack.c.b16 %v924, %v920
        %v1057 = vpack.c.b16 %v929, %v925
        %v1058 = vpack.c.b16 %v930, %v926
        %v1059 = vpack.c.b16 %v931, %v927
        %v1060 = vpack.c.b16 %v932, %v928
        %1189 = vmatprep.subr.bf16.mxu0 %v962
        %1190 = vmatpush1.bf16.msra.mxu0 %v961
        %1191 = vmatprep.subr.bf16.mxu0 %v958
        %1192 = vmatpush1.bf16.msra.mxu0 %v957
        %1193 = vmatprep.subr.bf16.mxu0 %v954
        %1194 = vmatpush1.bf16.msra.mxu0 %v953
        %1195 = vmatprep.subr.bf16.mxu0 %v950
        %1196 = vmatpush1.bf16.msra.mxu0 %v949
        %1197 = vmatprep.subr.bf16.mxu0 %v946
        %1198 = vmatpush1.bf16.msra.mxu0 %v945
        %1199 = vmatprep.subr.bf16.mxu0 %v942
        %1200 = vmatpush1.bf16.msra.mxu0 %v941
        %1201 = vmatprep.subr.bf16.mxu0 %v938
        %1202 = vmatpush1.bf16.msra.mxu0 %v937
        %1203 = vmatprep.subr.bf16.mxu0 %v934
        %1204 = vmatpush1.bf16.msra.mxu0 %v933
        %1205 = vmatprep.subr.bf16.mxu0 %v994
        %1206 = vmatpush2.bf16.msra.mxu0 %v993
        %1207 = vmatprep.subr.bf16.mxu0 %v990
        %1208 = vmatpush2.bf16.msra.mxu0 %v989
        %1209 = vmatprep.subr.bf16.mxu0 %v986
        %1210 = vmatpush2.bf16.msra.mxu0 %v985
        %1211 = vmatprep.subr.bf16.mxu0 %v982
        %1212 = vmatpush2.bf16.msra.mxu0 %v981
        %1213 = vmatprep.subr.bf16.mxu0 %v978
        %1214 = vmatpush2.bf16.msra.mxu0 %v977
        %1215 = vmatprep.subr.bf16.mxu0 %v974
        %1216 = vmatpush2.bf16.msra.mxu0 %v973
        %1217 = vmatprep.subr.bf16.mxu0 %v970
        %1218 = vmatpush2.bf16.msra.mxu0 %v969
        %1219 = vmatprep.subr.bf16.mxu0 %v966
        %1220 = vmatpush2.bf16.msra.mxu0 %v965
        %1221 = vmatprep.mubr.bf16.mxu0 %v542
        %1222 = vmatmul.mubr.bf16.gmra.mxu0 %v541
        %v1223 = vpop.f32.mrf.mxu0
        %v1224 = vadd.f32 0.0, %v1223
        %v1225 = vpop.f32.mrf.mxu0
        %v1226 = vadd.f32 0.0, %v1225
        %v1227 = vpop.f32.mrf.mxu0
        %v1228 = vadd.f32 0.0, %v1227
        %v1229 = vpop.f32.mrf.mxu0
        %v1230 = vadd.f32 0.0, %v1229
        %1231 = vdwg.mxu0
        %1232 = vmatprep.subr.bf16.mxu0 %v1026
        %1233 = vmatpush1.bf16.msra.mxu0 %v1025
        %1234 = vmatprep.subr.bf16.mxu0 %v1022
        %1235 = vmatpush1.bf16.msra.mxu0 %v1021
        %1236 = vmatprep.subr.bf16.mxu0 %v1018
        %1237 = vmatpush1.bf16.msra.mxu0 %v1017
        %1238 = vmatprep.subr.bf16.mxu0 %v1014
        %1239 = vmatpush1.bf16.msra.mxu0 %v1013
        %1240 = vmatprep.subr.bf16.mxu0 %v1010
        %1241 = vmatpush1.bf16.msra.mxu0 %v1009
        %1242 = vmatprep.subr.bf16.mxu0 %v1006
        %1243 = vmatpush1.bf16.msra.mxu0 %v1005
        %1244 = vmatprep.subr.bf16.mxu0 %v1002
        %1245 = vmatpush1.bf16.msra.mxu0 %v1001
        %1246 = vmatprep.subr.bf16.mxu0 %v998
        %1247 = vmatpush1.bf16.msra.mxu0 %v997
        %1248 = vmatprep.subr.bf16.mxu0 %v1058
        %1249 = vmatpush2.bf16.msra.mxu0 %v1057
        %1250 = vmatprep.subr.bf16.mxu0 %v1054
        %1251 = vmatpush2.bf16.msra.mxu0 %v1053
        %1252 = vmatprep.subr.bf16.mxu0 %v1050
        %1253 = vmatpush2.bf16.msra.mxu0 %v1049
        %1254 = vmatprep.subr.bf16.mxu0 %v1046
        %1255 = vmatpush2.bf16.msra.mxu0 %v1045
        %1256 = vmatprep.subr.bf16.mxu0 %v1042
        %1257 = vmatpush2.bf16.msra.mxu0 %v1041
        %1258 = vmatprep.subr.bf16.mxu0 %v1038
        %1259 = vmatpush2.bf16.msra.mxu0 %v1037
        %1260 = vmatprep.subr.bf16.mxu0 %v1034
        %1261 = vmatpush2.bf16.msra.mxu0 %v1033
        %1262 = vmatprep.subr.bf16.mxu0 %v1030
        %1263 = vmatpush2.bf16.msra.mxu0 %v1029
        %1264 = vmatprep.mubr.bf16.mxu0 %v544
        %1265 = vmatmul.mubr.bf16.gmra.mxu0 %v543
        %v1266 = vpop.f32.mrf.mxu0
        %v1267 = vadd.f32 %v1224, %v1266
        %v1268 = vpop.f32.mrf.mxu0
        %v1269 = vadd.f32 %v1226, %v1268
        %v1270 = vpop.f32.mrf.mxu0
        %v1271 = vadd.f32 %v1228, %v1270
        %v1272 = vpop.f32.mrf.mxu0
        %v1273 = vadd.f32 %v1230, %v1272
        %1274 = vdwg.mxu0
        %1275 = vmatprep.subr.bf16.mxu0 %v964
        %1276 = vmatpush1.bf16.msra.mxu0 %v963
        %1277 = vmatprep.subr.bf16.mxu0 %v960
        %1278 = vmatpush1.bf16.msra.mxu0 %v959
        %1279 = vmatprep.subr.bf16.mxu0 %v956
        %1280 = vmatpush1.bf16.msra.mxu0 %v955
        %1281 = vmatprep.subr.bf16.mxu0 %v952
        %1282 = vmatpush1.bf16.msra.mxu0 %v951
        %1283 = vmatprep.subr.bf16.mxu0 %v948
        %1284 = vmatpush1.bf16.msra.mxu0 %v947
        %1285 = vmatprep.subr.bf16.mxu0 %v944
        %1286 = vmatpush1.bf16.msra.mxu0 %v943
        %1287 = vmatprep.subr.bf16.mxu0 %v940
        %1288 = vmatpush1.bf16.msra.mxu0 %v939
        %1289 = vmatprep.subr.bf16.mxu0 %v936
        %1290 = vmatpush1.bf16.msra.mxu0 %v935
        %1291 = vmatprep.subr.bf16.mxu0 %v996
        %1292 = vmatpush2.bf16.msra.mxu0 %v995
        %1293 = vmatprep.subr.bf16.mxu0 %v992
        %1294 = vmatpush2.bf16.msra.mxu0 %v991
        %1295 = vmatprep.subr.bf16.mxu0 %v988
        %1296 = vmatpush2.bf16.msra.mxu0 %v987
        %1297 = vmatprep.subr.bf16.mxu0 %v984
        %1298 = vmatpush2.bf16.msra.mxu0 %v983
        %1299 = vmatprep.subr.bf16.mxu0 %v980
        %1300 = vmatpush2.bf16.msra.mxu0 %v979
        %1301 = vmatprep.subr.bf16.mxu0 %v976
        %1302 = vmatpush2.bf16.msra.mxu0 %v975
        %1303 = vmatprep.subr.bf16.mxu0 %v972
        %1304 = vmatpush2.bf16.msra.mxu0 %v971
        %1305 = vmatprep.subr.bf16.mxu0 %v968
        %1306 = vmatpush2.bf16.msra.mxu0 %v967
        %1307 = vmatprep.mubr.bf16.mxu0 %v542
        %1308 = vmatmul.mubr.bf16.gmra.mxu0 %v541
        %v1309 = vpop.f32.mrf.mxu0
        %v1310 = vadd.f32 0.0, %v1309
        %v1311 = vpop.f32.mrf.mxu0
        %v1312 = vadd.f32 0.0, %v1311
        %v1313 = vpop.f32.mrf.mxu0
        %v1314 = vadd.f32 0.0, %v1313
        %v1315 = vpop.f32.mrf.mxu0
        %v1316 = vadd.f32 0.0, %v1315
        %1317 = vdwg.mxu0
        %1318 = vmatprep.subr.bf16.mxu0 %v1028
        %1319 = vmatpush1.bf16.msra.mxu0 %v1027
        %1320 = vmatprep.subr.bf16.mxu0 %v1024
        %1321 = vmatpush1.bf16.msra.mxu0 %v1023
        %1322 = vmatprep.subr.bf16.mxu0 %v1020
        %1323 = vmatpush1.bf16.msra.mxu0 %v1019
        %1324 = vmatprep.subr.bf16.mxu0 %v1016
        %1325 = vmatpush1.bf16.msra.mxu0 %v1015
        %1326 = vmatprep.subr.bf16.mxu0 %v1012
        %1327 = vmatpush1.bf16.msra.mxu0 %v1011
        %1328 = vmatprep.subr.bf16.mxu0 %v1008
        %1329 = vmatpush1.bf16.msra.mxu0 %v1007
        %1330 = vmatprep.subr.bf16.mxu0 %v1004
        %1331 = vmatpush1.bf16.msra.mxu0 %v1003
        %1332 = vmatprep.subr.bf16.mxu0 %v1000
        %1333 = vmatpush1.bf16.msra.mxu0 %v999
        %1334 = vmatprep.subr.bf16.mxu0 %v1060
        %1335 = vmatpush2.bf16.msra.mxu0 %v1059
        %1336 = vmatprep.subr.bf16.mxu0 %v1056
        %1337 = vmatpush2.bf16.msra.mxu0 %v1055
        %1338 = vmatprep.subr.bf16.mxu0 %v1052
        %1339 = vmatpush2.bf16.msra.mxu0 %v1051
        %1340 = vmatprep.subr.bf16.mxu0 %v1048
        %1341 = vmatpush2.bf16.msra.mxu0 %v1047
        %1342 = vmatprep.subr.bf16.mxu0 %v1044
        %1343 = vmatpush2.bf16.msra.mxu0 %v1043
        %1344 = vmatprep.subr.bf16.mxu0 %v1040
        %1345 = vmatpush2.bf16.msra.mxu0 %v1039
        %1346 = vmatprep.subr.bf16.mxu0 %v1036
        %1347 = vmatpush2.bf16.msra.mxu0 %v1035
        %1348 = vmatprep.subr.bf16.mxu0 %v1032
        %1349 = vmatpush2.bf16.msra.mxu0 %v1031
        %1350 = vmatprep.mubr.bf16.mxu0 %v544
        %1351 = vmatmul.mubr.bf16.gmra.mxu0 %v543
        %v1352 = vpop.f32.mrf.mxu0
        %v1353 = vadd.f32 %v1310, %v1352
        %v1354 = vpop.f32.mrf.mxu0
        %v1355 = vadd.f32 %v1312, %v1354
        %v1356 = vpop.f32.mrf.mxu0
        %v1357 = vadd.f32 %v1314, %v1356
        %v1358 = vpop.f32.mrf.mxu0
        %v1359 = vadd.f32 %v1316, %v1358
        %1360 = vdwg.mxu0
        %v1361 = vadd.f32 %v389, %v1267
        %v1362 = vadd.f32 %v390, %v1269
        %v1363 = vadd.f32 %v391, %v1353
        %v1364 = vadd.f32 %v392, %v1355
        %v1365 = vadd.f32 %v393, %v1271
        %v1366 = vadd.f32 %v394, %v1273
        %v1367 = vadd.f32 %v395, %v1357
        %v1368 = vadd.f32 %v396, %v1359
        %1369 = vst [vmem:[#allocation2] sm:$0xff] %v1361
        %1370 = vst [vmem:[#allocation2 + $0x8] sm:$0xff] %v1362
        %1371 = vst [vmem:[#allocation2 + $0x10] sm:$0xff] %v1363
        %1372 = vst [vmem:[#allocation2 + $0x18] sm:$0xff] %v1364
        %1373 = vst [vmem:[#allocation2 + $0x20] sm:$0xff] %v1365
        %1374 = vst [vmem:[#allocation2 + $0x28] sm:$0xff] %v1366
        %1375 = vst [vmem:[#allocation2 + $0x30] sm:$0xff] %v1367
        %1376 = vst [vmem:[#allocation2 + $0x38] sm:$0xff] %v1368
        %p1377 = scmp.eq.s32.totalorder %s31, 1
        // Predicated region
        $region65: #{tpu_custom_call.1} parent=47 // pred_check
          %p1378 = pneg %p1377
        $region66: #{tpu_custom_call.1} parent=47 // pred_check_branch
          %1380 = sbr.rel (%p1378) target = $region68
        $region67: #{tpu_custom_call.1} parent=47 // pred_region
          %v1381 = vld [vmem:[#allocation2] sm:$0xff]
          %v1382 = vld [vmem:[#allocation2 + $0x8] sm:$0xff]
          %v1383 = vld [vmem:[#allocation2 + $0x10] sm:$0xff]
          %v1384 = vld [vmem:[#allocation2 + $0x18] sm:$0xff]
          %v1385 = vld [vmem:[#allocation2 + $0x20] sm:$0xff]
          %v1386 = vld [vmem:[#allocation2 + $0x28] sm:$0xff]
          %v1387 = vld [vmem:[#allocation2 + $0x30] sm:$0xff]
          %v1388 = vld [vmem:[#allocation2 + $0x38] sm:$0xff]
          %v1389 = vld [vmem:[%s2] sm:$0xf]
          %v1391 = vlaneseq
          %v1392 = vshrl.u32 %v1391, 7
          %v1393 = vsub.s32 0, %v1392
          %v1394 = vrot.slane %v1389, %v1393
          %v1395 = vlaneseq
          %v1396 = vshrl.u32 %v1395, 7
          %v1397 = vsub.s32 1, %v1396
          %v1398 = vrot.slane %v1389, %v1397
          %v1399 = vlaneseq
          %v1400 = vshrl.u32 %v1399, 7
          %v1401 = vsub.s32 2, %v1400
          %v1402 = vrot.slane %v1389, %v1401
          %v1403 = vlaneseq
          %v1404 = vshrl.u32 %v1403, 7
          %v1405 = vsub.s32 3, %v1404
          %v1406 = vrot.slane %v1389, %v1405
          %v1411 = vadd.f32 %v1381, %v1394
          %v1412 = vadd.f32 %v1382, %v1398
          %v1413 = vadd.f32 %v1383, %v1402
          %v1414 = vadd.f32 %v1384, %v1406
          %v1415 = vadd.f32 %v1385, %v1394
          %v1416 = vadd.f32 %v1386, %v1398
          %v1417 = vadd.f32 %v1387, %v1402
          %v1418 = vadd.f32 %v1388, %v1406
          %v1419 = vmul.f32 %v1411, 0.2
          %v1420 = vmul.f32 %v1412, 0.2
          %v1421 = vmul.f32 %v1413, 0.2
          %v1422 = vmul.f32 %v1414, 0.2
          %v1423 = vmul.f32 %v1415, 0.2
          %v1424 = vmul.f32 %v1416, 0.2
          %v1425 = vmul.f32 %v1417, 0.2
          %v1426 = vmul.f32 %v1418, 0.2
          %v1427 = vmax.f32 %v1411, %v1419
          %v1428 = vmax.f32 %v1412, %v1420
          %v1429 = vmax.f32 %v1413, %v1421
          %v1430 = vmax.f32 %v1414, %v1422
          %v1431 = vmax.f32 %v1415, %v1423
          %v1432 = vmax.f32 %v1416, %v1424
          %v1433 = vmax.f32 %v1417, %v1425
          %v1434 = vmax.f32 %v1418, %v1426
          %v1435 = vpack.c.bf16 %v1431, %v1427
          %v1436 = vpack.c.bf16 %v1432, %v1428
          %v1437 = vpack.c.bf16 %v1433, %v1429
          %v1438 = vpack.c.bf16 %v1434, %v1430
          %v1439 = vld [vmem:[#allocation8] sm:$0xff]
          %v1440 = vld [vmem:[#allocation8 + $0x8] sm:$0xff]
          %v1441 = vld [vmem:[#allocation8 + $0x10] sm:$0xff]
          %v1442 = vld [vmem:[#allocation8 + $0x18] sm:$0xff]
          %v1443 = vld [vmem:[#allocation8 + $0x20] sm:$0xff]
          %v1444 = vld [vmem:[#allocation8 + $0x28] sm:$0xff]
          %v1445 = vld [vmem:[#allocation8 + $0x30] sm:$0xff]
          %v1446 = vld [vmem:[#allocation8 + $0x38] sm:$0xff]
          %v1447 = vld [vmem:[#allocation8 + $0x40] sm:$0xff]
          %v1448 = vld [vmem:[#allocation8 + $0x48] sm:$0xff]
          %v1449 = vld [vmem:[#allocation8 + $0x50] sm:$0xff]
          %v1450 = vld [vmem:[#allocation8 + $0x58] sm:$0xff]
          %v1451 = vld [vmem:[#allocation8 + $0x60] sm:$0xff]
          %v1452 = vld [vmem:[#allocation8 + $0x68] sm:$0xff]
          %v1453 = vld [vmem:[#allocation8 + $0x70] sm:$0xff]
          %v1454 = vld [vmem:[#allocation8 + $0x78] sm:$0xff]
          %v1455 = vld [vmem:[#allocation8 + $0x80] sm:$0xff]
          %v1456 = vld [vmem:[#allocation8 + $0x88] sm:$0xff]
          %v1457 = vld [vmem:[#allocation8 + $0x90] sm:$0xff]
          %v1458 = vld [vmem:[#allocation8 + $0x98] sm:$0xff]
          %v1459 = vld [vmem:[#allocation8 + $0xa0] sm:$0xff]
          %v1460 = vld [vmem:[#allocation8 + $0xa8] sm:$0xff]
          %v1461 = vld [vmem:[#allocation8 + $0xb0] sm:$0xff]
          %v1462 = vld [vmem:[#allocation8 + $0xb8] sm:$0xff]
          %v1463 = vld [vmem:[#allocation8 + $0xc0] sm:$0xff]
          %v1464 = vld [vmem:[#allocation8 + $0xc8] sm:$0xff]
          %v1465 = vld [vmem:[#allocation8 + $0xd0] sm:$0xff]
          %v1466 = vld [vmem:[#allocation8 + $0xd8] sm:$0xff]
          %v1467 = vld [vmem:[#allocation8 + $0xe0] sm:$0xff]
          %v1468 = vld [vmem:[#allocation8 + $0xe8] sm:$0xff]
          %v1469 = vld [vmem:[#allocation8 + $0xf0] sm:$0xff]
          %v1470 = vld [vmem:[#allocation8 + $0xf8] sm:$0xff]
          %v1471 = vld [vmem:[#allocation8 + $0x100] sm:$0xff]
          %v1472 = vld [vmem:[#allocation8 + $0x108] sm:$0xff]
          %v1473 = vld [vmem:[#allocation8 + $0x110] sm:$0xff]
          %v1474 = vld [vmem:[#allocation8 + $0x118] sm:$0xff]
          %v1475 = vld [vmem:[#allocation8 + $0x120] sm:$0xff]
          %v1476 = vld [vmem:[#allocation8 + $0x128] sm:$0xff]
          %v1477 = vld [vmem:[#allocation8 + $0x130] sm:$0xff]
          %v1478 = vld [vmem:[#allocation8 + $0x138] sm:$0xff]
          %v1479 = vld [vmem:[#allocation8 + $0x140] sm:$0xff]
          %v1480 = vld [vmem:[#allocation8 + $0x148] sm:$0xff]
          %v1481 = vld [vmem:[#allocation8 + $0x150] sm:$0xff]
          %v1482 = vld [vmem:[#allocation8 + $0x158] sm:$0xff]
          %v1483 = vld [vmem:[#allocation8 + $0x160] sm:$0xff]
          %v1484 = vld [vmem:[#allocation8 + $0x168] sm:$0xff]
          %v1485 = vld [vmem:[#allocation8 + $0x170] sm:$0xff]
          %v1486 = vld [vmem:[#allocation8 + $0x178] sm:$0xff]
          %v1487 = vld [vmem:[#allocation8 + $0x180] sm:$0xff]
          %v1488 = vld [vmem:[#allocation8 + $0x188] sm:$0xff]
          %v1489 = vld [vmem:[#allocation8 + $0x190] sm:$0xff]
          %v1490 = vld [vmem:[#allocation8 + $0x198] sm:$0xff]
          %v1491 = vld [vmem:[#allocation8 + $0x1a0] sm:$0xff]
          %v1492 = vld [vmem:[#allocation8 + $0x1a8] sm:$0xff]
          %v1493 = vld [vmem:[#allocation8 + $0x1b0] sm:$0xff]
          %v1494 = vld [vmem:[#allocation8 + $0x1b8] sm:$0xff]
          %v1495 = vld [vmem:[#allocation8 + $0x1c0] sm:$0xff]
          %v1496 = vld [vmem:[#allocation8 + $0x1c8] sm:$0xff]
          %v1497 = vld [vmem:[#allocation8 + $0x1d0] sm:$0xff]
          %v1498 = vld [vmem:[#allocation8 + $0x1d8] sm:$0xff]
          %v1499 = vld [vmem:[#allocation8 + $0x1e0] sm:$0xff]
          %v1500 = vld [vmem:[#allocation8 + $0x1e8] sm:$0xff]
          %v1501 = vld [vmem:[#allocation8 + $0x1f0] sm:$0xff]
          %v1502 = vld [vmem:[#allocation8 + $0x1f8] sm:$0xff]
          %v1503 = vld [vmem:[%s4] sm:$0x3]
          %v1505 = vlaneseq
          %v1506 = vshrl.u32 %v1505, 7
          %v1507 = vsub.s32 0, %v1506
          %v1508 = vrot.slane %v1503, %v1507
          %v1509 = vlaneseq
          %v1510 = vshrl.u32 %v1509, 7
          %v1511 = vsub.s32 1, %v1510
          %v1512 = vrot.slane %v1503, %v1511
          %v1579 = vunpack.c.l.b16 %v1439
          %v1580 = vunpack.c.h.b16 %v1439
          %v1581 = vunpack.c.l.b16 %v1440
          %v1582 = vunpack.c.h.b16 %v1440
          %v1583 = vunpack.c.l.b16 %v1441
          %v1584 = vunpack.c.h.b16 %v1441
          %v1585 = vunpack.c.l.b16 %v1442
          %v1586 = vunpack.c.h.b16 %v1442
          %v1587 = vunpack.c.l.b16 %v1443
          %v1588 = vunpack.c.h.b16 %v1443
          %v1589 = vunpack.c.l.b16 %v1444
          %v1590 = vunpack.c.h.b16 %v1444
          %v1591 = vunpack.c.l.b16 %v1445
          %v1592 = vunpack.c.h.b16 %v1445
          %v1593 = vunpack.c.l.b16 %v1446
          %v1594 = vunpack.c.h.b16 %v1446
          %v1595 = vunpack.c.l.b16 %v1447
          %v1596 = vunpack.c.h.b16 %v1447
          %v1597 = vunpack.c.l.b16 %v1448
          %v1598 = vunpack.c.h.b16 %v1448
          %v1599 = vunpack.c.l.b16 %v1449
          %v1600 = vunpack.c.h.b16 %v1449
          %v1601 = vunpack.c.l.b16 %v1450
          %v1602 = vunpack.c.h.b16 %v1450
          %v1603 = vunpack.c.l.b16 %v1451
          %v1604 = vunpack.c.h.b16 %v1451
          %v1605 = vunpack.c.l.b16 %v1452
          %v1606 = vunpack.c.h.b16 %v1452
          %v1607 = vunpack.c.l.b16 %v1453
          %v1608 = vunpack.c.h.b16 %v1453
          %v1609 = vunpack.c.l.b16 %v1454
          %v1610 = vunpack.c.h.b16 %v1454
          %v1611 = vunpack.c.l.b16 %v1455
          %v1612 = vunpack.c.h.b16 %v1455
          %v1613 = vunpack.c.l.b16 %v1456
          %v1614 = vunpack.c.h.b16 %v1456
          %v1615 = vunpack.c.l.b16 %v1457
          %v1616 = vunpack.c.h.b16 %v1457
          %v1617 = vunpack.c.l.b16 %v1458
          %v1618 = vunpack.c.h.b16 %v1458
          %v1619 = vunpack.c.l.b16 %v1459
          %v1620 = vunpack.c.h.b16 %v1459
          %v1621 = vunpack.c.l.b16 %v1460
          %v1622 = vunpack.c.h.b16 %v1460
          %v1623 = vunpack.c.l.b16 %v1461
          %v1624 = vunpack.c.h.b16 %v1461
          %v1625 = vunpack.c.l.b16 %v1462
          %v1626 = vunpack.c.h.b16 %v1462
          %v1627 = vunpack.c.l.b16 %v1463
          %v1628 = vunpack.c.h.b16 %v1463
          %v1629 = vunpack.c.l.b16 %v1464
          %v1630 = vunpack.c.h.b16 %v1464
          %v1631 = vunpack.c.l.b16 %v1465
          %v1632 = vunpack.c.h.b16 %v1465
          %v1633 = vunpack.c.l.b16 %v1466
          %v1634 = vunpack.c.h.b16 %v1466
          %v1635 = vunpack.c.l.b16 %v1467
          %v1636 = vunpack.c.h.b16 %v1467
          %v1637 = vunpack.c.l.b16 %v1468
          %v1638 = vunpack.c.h.b16 %v1468
          %v1639 = vunpack.c.l.b16 %v1469
          %v1640 = vunpack.c.h.b16 %v1469
          %v1641 = vunpack.c.l.b16 %v1470
          %v1642 = vunpack.c.h.b16 %v1470
          %v1643 = vunpack.c.l.b16 %v1471
          %v1644 = vunpack.c.h.b16 %v1471
          %v1645 = vunpack.c.l.b16 %v1472
          %v1646 = vunpack.c.h.b16 %v1472
          %v1647 = vunpack.c.l.b16 %v1473
          %v1648 = vunpack.c.h.b16 %v1473
          %v1649 = vunpack.c.l.b16 %v1474
          %v1650 = vunpack.c.h.b16 %v1474
          %v1651 = vunpack.c.l.b16 %v1475
          %v1652 = vunpack.c.h.b16 %v1475
          %v1653 = vunpack.c.l.b16 %v1476
          %v1654 = vunpack.c.h.b16 %v1476
          %v1655 = vunpack.c.l.b16 %v1477
          %v1656 = vunpack.c.h.b16 %v1477
          %v1657 = vunpack.c.l.b16 %v1478
          %v1658 = vunpack.c.h.b16 %v1478
          %v1659 = vunpack.c.l.b16 %v1479
          %v1660 = vunpack.c.h.b16 %v1479
          %v1661 = vunpack.c.l.b16 %v1480
          %v1662 = vunpack.c.h.b16 %v1480
          %v1663 = vunpack.c.l.b16 %v1481
          %v1664 = vunpack.c.h.b16 %v1481
          %v1665 = vunpack.c.l.b16 %v1482
          %v1666 = vunpack.c.h.b16 %v1482
          %v1667 = vunpack.c.l.b16 %v1483
          %v1668 = vunpack.c.h.b16 %v1483
          %v1669 = vunpack.c.l.b16 %v1484
          %v1670 = vunpack.c.h.b16 %v1484
          %v1671 = vunpack.c.l.b16 %v1485
          %v1672 = vunpack.c.h.b16 %v1485
          %v1673 = vunpack.c.l.b16 %v1486
          %v1674 = vunpack.c.h.b16 %v1486
          %v1675 = vunpack.c.l.b16 %v1487
          %v1676 = vunpack.c.h.b16 %v1487
          %v1677 = vunpack.c.l.b16 %v1488
          %v1678 = vunpack.c.h.b16 %v1488
          %v1679 = vunpack.c.l.b16 %v1489
          %v1680 = vunpack.c.h.b16 %v1489
          %v1681 = vunpack.c.l.b16 %v1490
          %v1682 = vunpack.c.h.b16 %v1490
          %v1683 = vunpack.c.l.b16 %v1491
          %v1684 = vunpack.c.h.b16 %v1491
          %v1685 = vunpack.c.l.b16 %v1492
          %v1686 = vunpack.c.h.b16 %v1492
          %v1687 = vunpack.c.l.b16 %v1493
          %v1688 = vunpack.c.h.b16 %v1493
          %v1689 = vunpack.c.l.b16 %v1494
          %v1690 = vunpack.c.h.b16 %v1494
          %v1691 = vunpack.c.l.b16 %v1495
          %v1692 = vunpack.c.h.b16 %v1495
          %v1693 = vunpack.c.l.b16 %v1496
          %v1694 = vunpack.c.h.b16 %v1496
          %v1695 = vunpack.c.l.b16 %v1497
          %v1696 = vunpack.c.h.b16 %v1497
          %v1697 = vunpack.c.l.b16 %v1498
          %v1698 = vunpack.c.h.b16 %v1498
          %v1699 = vunpack.c.l.b16 %v1499
          %v1700 = vunpack.c.h.b16 %v1499
          %v1701 = vunpack.c.l.b16 %v1500
          %v1702 = vunpack.c.h.b16 %v1500
          %v1703 = vunpack.c.l.b16 %v1501
          %v1704 = vunpack.c.h.b16 %v1501
          %v1705 = vunpack.c.l.b16 %v1502
          %v1706 = vunpack.c.h.b16 %v1502
          %v1707 = vpack.c.b16 %v1581, %v1579
          %v1708 = vpack.c.b16 %v1582, %v1580
          %v1709 = vpack.c.b16 %v1585, %v1583
          %v1710 = vpack.c.b16 %v1586, %v1584
          %v1711 = vpack.c.b16 %v1589, %v1587
          %v1712 = vpack.c.b16 %v1590, %v1588
          %v1713 = vpack.c.b16 %v1593, %v1591
          %v1714 = vpack.c.b16 %v1594, %v1592
          %v1715 = vpack.c.b16 %v1597, %v1595
          %v1716 = vpack.c.b16 %v1598, %v1596
          %v1717 = vpack.c.b16 %v1601, %v1599
          %v1718 = vpack.c.b16 %v1602, %v1600
          %v1719 = vpack.c.b16 %v1605, %v1603
          %v1720 = vpack.c.b16 %v1606, %v1604
          %v1721 = vpack.c.b16 %v1609, %v1607
          %v1722 = vpack.c.b16 %v1610, %v1608
          %v1723 = vpack.c.b16 %v1613, %v1611
          %v1724 = vpack.c.b16 %v1614, %v1612
          %v1725 = vpack.c.b16 %v1617, %v1615
          %v1726 = vpack.c.b16 %v1618, %v1616
          %v1727 = vpack.c.b16 %v1621, %v1619
          %v1728 = vpack.c.b16 %v1622, %v1620
          %v1729 = vpack.c.b16 %v1625, %v1623
          %v1730 = vpack.c.b16 %v1626, %v1624
          %v1731 = vpack.c.b16 %v1629, %v1627
          %v1732 = vpack.c.b16 %v1630, %v1628
          %v1733 = vpack.c.b16 %v1633, %v1631
          %v1734 = vpack.c.b16 %v1634, %v1632
          %v1735 = vpack.c.b16 %v1637, %v1635
          %v1736 = vpack.c.b16 %v1638, %v1636
          %v1737 = vpack.c.b16 %v1641, %v1639
          %v1738 = vpack.c.b16 %v1642, %v1640
          %v1739 = vpack.c.b16 %v1645, %v1643
          %v1740 = vpack.c.b16 %v1646, %v1644
          %v1741 = vpack.c.b16 %v1649, %v1647
          %v1742 = vpack.c.b16 %v1650, %v1648
          %v1743 = vpack.c.b16 %v1653, %v1651
          %v1744 = vpack.c.b16 %v1654, %v1652
          %v1745 = vpack.c.b16 %v1657, %v1655
          %v1746 = vpack.c.b16 %v1658, %v1656
          %v1747 = vpack.c.b16 %v1661, %v1659
          %v1748 = vpack.c.b16 %v1662, %v1660
          %v1749 = vpack.c.b16 %v1665, %v1663
          %v1750 = vpack.c.b16 %v1666, %v1664
          %v1751 = vpack.c.b16 %v1669, %v1667
          %v1752 = vpack.c.b16 %v1670, %v1668
          %v1753 = vpack.c.b16 %v1673, %v1671
          %v1754 = vpack.c.b16 %v1674, %v1672
          %v1755 = vpack.c.b16 %v1677, %v1675
          %v1756 = vpack.c.b16 %v1678, %v1676
          %v1757 = vpack.c.b16 %v1681, %v1679
          %v1758 = vpack.c.b16 %v1682, %v1680
          %v1759 = vpack.c.b16 %v1685, %v1683
          %v1760 = vpack.c.b16 %v1686, %v1684
          %v1761 = vpack.c.b16 %v1689, %v1687
          %v1762 = vpack.c.b16 %v1690, %v1688
          %v1763 = vpack.c.b16 %v1693, %v1691
          %v1764 = vpack.c.b16 %v1694, %v1692
          %v1765 = vpack.c.b16 %v1697, %v1695
          %v1766 = vpack.c.b16 %v1698, %v1696
          %v1767 = vpack.c.b16 %v1701, %v1699
          %v1768 = vpack.c.b16 %v1702, %v1700
          %v1769 = vpack.c.b16 %v1705, %v1703
          %v1770 = vpack.c.b16 %v1706, %v1704
          %1835 = vmatprep.subr.bf16.mxu0 %v1722
          %1836 = vmatpush1.bf16.msra.mxu0 %v1721
          %1837 = vmatprep.subr.bf16.mxu0 %v1720
          %1838 = vmatpush1.bf16.msra.mxu0 %v1719
          %1839 = vmatprep.subr.bf16.mxu0 %v1718
          %1840 = vmatpush1.bf16.msra.mxu0 %v1717
          %1841 = vmatprep.subr.bf16.mxu0 %v1716
          %1842 = vmatpush1.bf16.msra.mxu0 %v1715
          %1843 = vmatprep.subr.bf16.mxu0 %v1714
          %1844 = vmatpush1.bf16.msra.mxu0 %v1713
          %1845 = vmatprep.subr.bf16.mxu0 %v1712
          %1846 = vmatpush1.bf16.msra.mxu0 %v1711
          %1847 = vmatprep.subr.bf16.mxu0 %v1710
          %1848 = vmatpush1.bf16.msra.mxu0 %v1709
          %1849 = vmatprep.subr.bf16.mxu0 %v1708
          %1850 = vmatpush1.bf16.msra.mxu0 %v1707
          %1851 = vmatprep.subr.bf16.mxu0 %v1738
          %1852 = vmatpush2.bf16.msra.mxu0 %v1737
          %1853 = vmatprep.subr.bf16.mxu0 %v1736
          %1854 = vmatpush2.bf16.msra.mxu0 %v1735
          %1855 = vmatprep.subr.bf16.mxu0 %v1734
          %1856 = vmatpush2.bf16.msra.mxu0 %v1733
          %1857 = vmatprep.subr.bf16.mxu0 %v1732
          %1858 = vmatpush2.bf16.msra.mxu0 %v1731
          %1859 = vmatprep.subr.bf16.mxu0 %v1730
          %1860 = vmatpush2.bf16.msra.mxu0 %v1729
          %1861 = vmatprep.subr.bf16.mxu0 %v1728
          %1862 = vmatpush2.bf16.msra.mxu0 %v1727
          %1863 = vmatprep.subr.bf16.mxu0 %v1726
          %1864 = vmatpush2.bf16.msra.mxu0 %v1725
          %1865 = vmatprep.subr.bf16.mxu0 %v1724
          %1866 = vmatpush2.bf16.msra.mxu0 %v1723
          %1867 = vmatprep.mubr.bf16.mxu0 %v1436
          %1868 = vmatmul.mubr.bf16.gmra.mxu0 %v1435
          %v1869 = vpop.f32.mrf.mxu0
          %v1870 = vadd.f32 %v1508, %v1869
          %v1871 = vpop.f32.mrf.mxu0
          %v1872 = vadd.f32 %v1512, %v1871
          %v1873 = vpop.f32.mrf.mxu0
          %v1874 = vadd.f32 %v1508, %v1873
          %v1875 = vpop.f32.mrf.mxu0
          %v1876 = vadd.f32 %v1512, %v1875
          %1877 = vdwg.mxu0
          %1878 = vmatprep.subr.bf16.mxu0 %v1754
          %1879 = vmatpush1.bf16.msra.mxu0 %v1753
          %1880 = vmatprep.subr.bf16.mxu0 %v1752
          %1881 = vmatpush1.bf16.msra.mxu0 %v1751
          %1882 = vmatprep.subr.bf16.mxu0 %v1750
          %1883 = vmatpush1.bf16.msra.mxu0 %v1749
          %1884 = vmatprep.subr.bf16.mxu0 %v1748
          %1885 = vmatpush1.bf16.msra.mxu0 %v1747
          %1886 = vmatprep.subr.bf16.mxu0 %v1746
          %1887 = vmatpush1.bf16.msra.mxu0 %v1745
          %1888 = vmatprep.subr.bf16.mxu0 %v1744
          %1889 = vmatpush1.bf16.msra.mxu0 %v1743
          %1890 = vmatprep.subr.bf16.mxu0 %v1742
          %1891 = vmatpush1.bf16.msra.mxu0 %v1741
          %1892 = vmatprep.subr.bf16.mxu0 %v1740
          %1893 = vmatpush1.bf16.msra.mxu0 %v1739
          %1894 = vmatprep.subr.bf16.mxu0 %v1770
          %1895 = vmatpush2.bf16.msra.mxu0 %v1769
          %1896 = vmatprep.subr.bf16.mxu0 %v1768
          %1897 = vmatpush2.bf16.msra.mxu0 %v1767
          %1898 = vmatprep.subr.bf16.mxu0 %v1766
          %1899 = vmatpush2.bf16.msra.mxu0 %v1765
          %1900 = vmatprep.subr.bf16.mxu0 %v1764
          %1901 = vmatpush2.bf16.msra.mxu0 %v1763
          %1902 = vmatprep.subr.bf16.mxu0 %v1762
          %1903 = vmatpush2.bf16.msra.mxu0 %v1761
          %1904 = vmatprep.subr.bf16.mxu0 %v1760
          %1905 = vmatpush2.bf16.msra.mxu0 %v1759
          %1906 = vmatprep.subr.bf16.mxu0 %v1758
          %1907 = vmatpush2.bf16.msra.mxu0 %v1757
          %1908 = vmatprep.subr.bf16.mxu0 %v1756
          %1909 = vmatpush2.bf16.msra.mxu0 %v1755
          %1910 = vmatprep.mubr.bf16.mxu0 %v1438
          %1911 = vmatmul.mubr.bf16.gmra.mxu0 %v1437
          %v1912 = vpop.f32.mrf.mxu0
          %v1913 = vadd.f32 %v1870, %v1912
          %v1914 = vpop.f32.mrf.mxu0
          %v1915 = vadd.f32 %v1872, %v1914
          %v1916 = vpop.f32.mrf.mxu0
          %v1917 = vadd.f32 %v1874, %v1916
          %v1918 = vpop.f32.mrf.mxu0
          %v1919 = vadd.f32 %v1876, %v1918
          %1920 = vdwg.mxu0
          %v1921 = vmul.f32 %v1913, 0.2
          %v1922 = vmul.f32 %v1915, 0.2
          %v1923 = vmul.f32 %v1917, 0.2
          %v1924 = vmul.f32 %v1919, 0.2
          %v1925 = vmax.f32 %v1913, %v1921
          %v1926 = vmax.f32 %v1915, %v1922
          %v1927 = vmax.f32 %v1917, %v1923
          %v1928 = vmax.f32 %v1919, %v1924
          %v1929 = vld [vmem:[%s5] sm:$0x3]
          %v1930 = vunpack.c.l.bf16 %v1929
          %v1932 = vlaneseq
          %v1933 = vshrl.u32 %v1932, 7
          %v1934 = vsub.s32 0, %v1933
          %v1935 = vrot.slane %v1930, %v1934
          %v1936 = vlaneseq
          %v1937 = vshrl.u32 %v1936, 7
          %v1938 = vsub.s32 2, %v1937
          %v1939 = vrot.slane %v1930, %v1938
          %v1942 = vlaneseq
          %v1943 = vshrl.u32 %v1942, 7
          %v1944 = vsub.s32 0, %v1943
          %v1945 = vrot.slane %v1935, %v1944
          %v1946 = vlaneseq
          %v1947 = vshrl.u32 %v1946, 7
          %v1948 = vsub.s32 0, %v1947
          %v1949 = vrot.slane %v1939, %v1948
          %v1950 = vmul.f32 %v1925, %v1945
          %v1951 = vmul.f32 %v1926, %v1949
          %v1952 = vmul.f32 %v1927, %v1945
          %v1953 = vmul.f32 %v1928, %v1949
          %v1954 = vadd.f32 %v1950, %v1951
          %1955 = vadd.xlane.f32.xlu0 %v1954
          %v1956 = vpop.xlane.xlu0 %1955
          %v1957 = vadd.f32 %v1952, %v1953
          %1958 = vadd.xlane.f32.xlu0 %v1957
          %v1959 = vpop.xlane.xlu0 %1958
          %v1960 = vld [vmem:[#allocation3] sm:$0x1]
          %v1962 = vlaneseq
          %v1963 = vshrl.u32 %v1962, 7
          %v1964 = vsub.s32 0, %v1963
          %v1965 = vrot.slane %v1960, %v1964
          %v1967 = vadd.f32 %v1956, %v1965
          %v1968 = vadd.f32 %v1959, %v1965
          %vm1969 = vcmask 7168
          %1970 = vst.msk [vmem:[%s375] sm:$0xff] %vm1969, %v1967
          %1971 = vst.msk [vmem:[%s375 + $0x8] sm:$0xff] %vm1969, %v1968
        $region68: #{tpu_custom_call.1} parent=47 // pred_fallthru
          _
        %s1972 = smul.u32 2, %s30
        %p1973 = scmp.lt.s32.totalorder %s1972, 1
        %s1974 = scalar_select %p1973, %s1972, 1
        %s1975 = smul.addr %s1974, 8
        %s1976 = scalar_lea.vmem %s7, %s1975
        // Predicated region
        $region69: #{tpu_custom_call.1} parent=47 // pred_check
          %p1977 = pneg %p215
        $region70: #{tpu_custom_call.1} parent=47 // pred_check_branch
          %1979 = sbr.rel (%p1977) target = $region72
        $region71: #{tpu_custom_call.1} parent=47 // pred_region
          %s1980 = smul.u32 2, %s30
        $region72: #{tpu_custom_call.1} parent=47 // pred_fallthru
          _
        // Predicated region
        $region73: #{tpu_custom_call.1} parent=47 // pred_check
          %p1981 = pneg %p215
        $region74: #{tpu_custom_call.1} parent=47 // pred_check_branch
          %1983 = sbr.rel (%p1981) target = $region76
        $region75: #{tpu_custom_call.1} parent=47 // pred_region
          %s1984 = smul.u32 2, %s30
          %p1985 = scmp.lt.s32.totalorder %s1984, 1
          %s1986 = scalar_select %p1985, %s1984, 1
          %s1987 = smul.addr %s1986, 8
          %s1988 = scalar_lea.vmem %s7, %s1987
        $region76: #{tpu_custom_call.1} parent=47 // pred_fallthru
          _
      $region48: #{tpu_custom_call.1} parent=5 // pred_fallthru
        _
      %p1989 = scmp.le.s32.totalorder 2, %s21
      // Predicated region
      $region77: #{tpu_custom_call.1} parent=5 // pred_check
        %p1990 = pneg %p1989
      $region78: #{tpu_custom_call.1} parent=5 // pred_check_branch
        %1992 = sbr.rel (%p1990) target = $region80
      $region79: #{tpu_custom_call.1} parent=5 // pred_region
        %s1993 = ssub.s32 %s21, 2
      $region80: #{tpu_custom_call.1} parent=5 // pred_fallthru
        _
    $region6: #{tpu_custom_call.1} parent=1 // loop_footer
      %s25 = sadd.s32 1, %s21
    $region7: #{tpu_custom_call.1} parent=1 // loop_footer_branch
      %20 = sbr.rel target = $region3
    $region8: #{tpu_custom_call.1} parent=1 // loop_exit
      _
    %1994 = vsyncpa [#allocation5], 1
    %s1995 = scalar_lea.sflag [#allocation5], 1
    %1996 = vsyncpa %s1995, 1
    %1997 = vsyncpa [#allocation7], 1
    %s1998 = scalar_lea.sflag [#allocation7], 1
    %1999 = vsyncpa %s1998, 1

</llo_original>
